<compile_context>
chip_gen: v7x
topology: tpu7x:2x2x1
jax: 0.10.0
libtpu: 0.0.40
codegen_flags: <defaults>
</compile_context>

<pallas_src>
import math
from functools import partial

import jax
import jax.numpy as jnp
from jax.experimental import pallas as pl
from jax.experimental.pallas import tpu as pltpu


def _make_divisible(v, divisor, min_value=None):
    if min_value is None:
        min_value = divisor
    new_v = max(min_value, int(v + divisor / 2) // divisor * divisor)
    if new_v < 0.9 * v:
        new_v += divisor
    return new_v


def _shift_zero(v, t, axis):
    """out[..., i, ...] = v[..., i + t, ...] along `axis`, zero-filled at edges."""
    if t == 0:
        return v
    n = v.shape[axis]
    zshape = list(v.shape)
    zshape[axis] = abs(t)
    zeros = jnp.zeros(zshape, v.dtype)
    if t > 0:
        kept = jax.lax.slice_in_dim(v, t, n, axis=axis)
        return jnp.concatenate([kept, zeros], axis=axis)
    kept = jax.lax.slice_in_dim(v, 0, n + t, axis=axis)
    return jnp.concatenate([zeros, kept], axis=axis)


# ----------------------------------------------------------------------------
# Pallas kernel: conv3x3 -> BN -> SiLU -> conv1x1 -> BN -> (+residual)
# One grid step processes a block of NB images, everything lane-dense.
# ----------------------------------------------------------------------------
def fused_mbconv_kernel(x_ref, w1b_ref, b1_ref, w2b_ref, b2_ref, o_ref, *,
                        NB, H, WCin, WCexp, WCout, K, use_res, compute_dtype):
    # x_ref  : (NB, H, W*Cin)        lane-dense input tile (W*Cin = 128 here)
    # w1b_ref: (K, W*Cin, W*Cexp)    row-banded 3x3 weights, one band per dy tap;
    #                                dx taps + SAME x-padding folded into the band,
    #                                BN1 scale folded, pre-cast to compute_dtype
    # b1_ref : (1, W*Cexp)           folded BN1 bias, tiled over W (f32)
    # w2b_ref: (W*Cexp, W*Cout)      block-diagonal 1x1 weights, BN2 scale folded
    # b2_ref : (1, W*Cout)           folded BN2 bias, tiled over W (f32)
    # o_ref  : (NB, H, W*Cout)       lane-dense output tile
    P = (K - 1) // 2
    M = NB * H

    x = x_ref[...]                                   # (NB, H, W*Cin), f32
    xc = x.astype(compute_dtype)

    # 3x3 conv as K row-banded matmuls: only K sublane row-shifts (per-image,
    # zero-filled "same" padding in y); x-padding is baked into the band.
    h = None
    for dy in range(K):
        xs = _shift_zero(xc, dy - P, axis=1)         # spatial-row shift in-image
        part = jnp.dot(xs.reshape(M, WCin), w1b_ref[dy],
                       preferred_element_type=jnp.float32)
        h = part if h is None else h + part          # (M, W*Cexp) f32

    # BN1 bias (scale pre-folded into the band) + SiLU, in f32.
    h = h + b1_ref[...]
    h = h * jax.nn.sigmoid(h)

    # 1x1 projection as a block-diagonal matmul -> lane-dense (M, W*Cout).
    y = jnp.dot(h.astype(compute_dtype), w2b_ref[...],
                preferred_element_type=jnp.float32)
    y = y + b2_ref[...]
    y = y.reshape(NB, H, WCout)                      # layout-free (leading-dim split)

    if use_res:
        # stride==1 and Cin==Cout: residual is the lane-dense input tile itself.
        # TODO(synk): StochasticDepth('row') training-mode random row drop not
        # implemented; eval-mode identity semantics are used here.
        y = y + x

    o_ref[...] = y.astype(o_ref.dtype)


def _banded_weights(w1f, w2f, W, K):
    """Build the row-banded 3x3 weights and block-diagonal 1x1 weights.

    w1f: (K, K, Cin, Cexp) with BN1 scale folded.
    w2f: (Cexp, Cout)      with BN2 scale folded.
    Returns w1b (K, W*Cin, W*Cexp) and w2b (W*Cexp, W*Cout), both f32.
    Lane order is x-major then channel: lane = x * C + c.
    """
    P = (K - 1) // 2
    bands = []
    for dy in range(K):
        band = None
        for dx in range(K):
            # band[xi*Cin+ci, xo*Cexp+co] = w1f[dy, dx, ci, co] if xi == xo + dx - P
            sel = jnp.eye(W, k=P - dx, dtype=jnp.float32)     # [xi, xo]
            blk = jnp.kron(sel, w1f[dy, dx].astype(jnp.float32))
            band = blk if band is None else band + blk
        bands.append(band)
    w1b = jnp.stack(bands)                                    # (K, W*Cin, W*Cexp)
    w2b = jnp.kron(jnp.eye(W, dtype=jnp.float32), w2f.astype(jnp.float32))
    return w1b, w2b


def fused_mbconv(x_nchw, w1_hwio, g1, be1, m1, v1, w2_io, g2, be2, m2, v2, *,
                 eps=1e-5, stride=1, nb=None, compute_dtype=jnp.bfloat16):
    """FusedMBConv forward (eval mode). x_nchw: (N, Cin, H, W) -> (N, Cout, H, W)."""
    N, Cin, H, W = x_nchw.shape
    K = w1_hwio.shape[0]
    Cexp = w1_hwio.shape[-1]
    Cout = w2_io.shape[-1]

    if stride != 1:
        # TODO(synk): stride=2 FusedMBConv variant (and the no-expansion
        # single-conv variant) not implemented in this kernel.
        raise NotImplementedError("only stride=1 FusedMBConv is implemented")
    use_res = (stride == 1 and Cin == Cout)

    # Fold BatchNorm (eval mode) into conv weights / per-channel biases (f32).
    s1 = g1 / jnp.sqrt(v1 + eps)
    b1 = be1 - m1 * s1
    s2 = g2 / jnp.sqrt(v2 + eps)
    b2 = be2 - m2 * s2
    w1f = w1_hwio * s1                               # (K, K, Cin, Cexp)
    w2f = w2_io * s2                                 # (Cexp, Cout)

    # One-time weight preprocessing: banded 3x3 + block-diagonal 1x1 weights,
    # pre-cast to compute_dtype so the kernel never casts weight tiles.
    w1b, w2b = _banded_weights(w1f, w2f, W, K)
    w1b = w1b.astype(compute_dtype)
    w2b = w2b.astype(compute_dtype)
    b1t = jnp.tile(b1, W).reshape(1, W * Cexp).astype(jnp.float32)
    b2t = jnp.tile(b2, W).reshape(1, W * Cout).astype(jnp.float32)

    # NCHW -> lane-dense (N, H, W*Cin); W*Cin = 128 for this config.
    x = jnp.transpose(x_nchw, (0, 2, 3, 1)).reshape(N, H, W * Cin)

    if nb is None:
        # Single grid step for small problems (v5e/v6e: 1 TC, extra steps are
        # pure ~0.35us overhead and shrink the matmul M).  For large batches
        # keep an even number of steps so the 'parallel' axis can shard across
        # v7x's two TensorCores; cap the per-step tile so double-buffered
        # in+out blocks fit v7x's 64 MiB physical VMEM (32 MiB scoped limit).
        nb = N // 2 if (N % 2 == 0 and (N // 2) * H >= 1024) else N
        while nb * H > 8192 and nb % 2 == 0:
            nb //= 2
    assert N % nb == 0, "batch block size must divide N"

    kernel = partial(fused_mbconv_kernel, NB=nb, H=H, WCin=W * Cin,
                     WCexp=W * Cexp, WCout=W * Cout, K=K, use_res=use_res,
                     compute_dtype=compute_dtype)

    out = pl.pallas_call(
        kernel,
        out_shape=jax.ShapeDtypeStruct((N, H, W * Cout), jnp.float32),
        grid_spec=pltpu.PrefetchScalarGridSpec(
            num_scalar_prefetch=0,
            grid=(N // nb,),
            in_specs=[
                pl.BlockSpec((nb, H, W * Cin), lambda i: (i, 0, 0)),
                pl.BlockSpec((K, W * Cin, W * Cexp), lambda i: (0, 0, 0)),
                pl.BlockSpec((1, W * Cexp), lambda i: (0, 0)),
                pl.BlockSpec((W * Cexp, W * Cout), lambda i: (0, 0)),
                pl.BlockSpec((1, W * Cout), lambda i: (0, 0)),
            ],
            out_specs=pl.BlockSpec((nb, H, W * Cout), lambda i: (i, 0, 0)),
        ),
        compiler_params=pltpu.CompilerParams(
            dimension_semantics=("parallel",),
            vmem_limit_bytes=32 * 1024 * 1024,
        ),
    )(x, w1b, b1t, w2b, b2t)

    # lane-dense (N, H, W*Cout) -> NCHW to match the PyTorch output convention.
    return jnp.transpose(out.reshape(N, H, W, Cout), (0, 3, 1, 2))


# ----------------------------------------------------------------------------
# Pure-JAX reference (un-fused) for a correctness sanity check.
# ----------------------------------------------------------------------------
def reference(x_nchw, w1_hwio, g1, be1, m1, v1, w2_hwio, g2, be2, m2, v2, eps):
    x = jnp.transpose(x_nchw, (0, 2, 3, 1))
    y = jax.lax.conv_general_dilated(x, w1_hwio, (1, 1), 'SAME',
                                     dimension_numbers=('NHWC', 'HWIO', 'NHWC'))
    y = (y - m1) / jnp.sqrt(v1 + eps) * g1 + be1
    y = y * jax.nn.sigmoid(y)
    y = jax.lax.conv_general_dilated(y, w2_hwio, (1, 1), 'SAME',
                                     dimension_numbers=('NHWC', 'HWIO', 'NHWC'))
    y = (y - m2) / jnp.sqrt(v2 + eps) * g2 + be2
    y = y + x
    return jnp.transpose(y, (0, 3, 1, 2))


if __name__ == "__main__":
    # FusedMBConvConfig(expand_ratio=4, kernel=3, stride=1, in=8, out=8, layers=1)
    N, Cin, H, W = 2, 8, 16, 16
    expand_ratio, K = 4.0, 3
    Cexp = _make_divisible(Cin * expand_ratio, 8)   # 32
    Cout = Cin                                      # 8, residual path active
    eps = 1e-5

    key = jax.random.PRNGKey(0)
    ks = jax.random.split(key, 12)
    x = jax.random.normal(ks[0], (N, Cin, H, W), jnp.float32)

    # Conv + BatchNorm parameters (deterministic synthetic init).
    w1 = jax.random.normal(ks[1], (K, K, Cin, Cexp), jnp.float32) * (
        1.0 / math.sqrt(K * K * Cin))
    g1 = 1.0 + 0.1 * jax.random.normal(ks[2], (Cexp,), jnp.float32)
    be1 = 0.1 * jax.random.normal(ks[3], (Cexp,), jnp.float32)
    m1 = 0.1 * jax.random.normal(ks[4], (Cexp,), jnp.float32)
    v1 = jnp.abs(jax.random.normal(ks[5], (Cexp,), jnp.float32)) + 0.5

    w2 = jax.random.normal(ks[6], (1, 1, Cexp, Cout), jnp.float32) * (
        1.0 / math.sqrt(Cexp))
    g2 = 1.0 + 0.1 * jax.random.normal(ks[7], (Cout,), jnp.float32)
    be2 = 0.1 * jax.random.normal(ks[8], (Cout,), jnp.float32)
    m2 = 0.1 * jax.random.normal(ks[9], (Cout,), jnp.float32)
    v2 = jnp.abs(jax.random.normal(ks[10], (Cout,), jnp.float32)) + 0.5

    # Default path: bf16 matmul operands, f32 accumulate (loose tolerance).
    out = fused_mbconv(x, w1, g1, be1, m1, v1, w2[0, 0], g2, be2, m2, v2,
                       eps=eps)
    out = jax.block_until_ready(out)

    ref = reference(x, w1, g1, be1, m1, v1, w2, g2, be2, m2, v2, eps)
    if not jnp.allclose(out, ref, atol=5e-2, rtol=5e-2):
        err = float(jnp.max(jnp.abs(out - ref)))
        raise AssertionError(
            f"Pallas FusedMBConv (bf16) mismatch vs JAX reference "
            f"(max abs err {err})")

    # Full-precision path (tight tolerance).
    out_f32 = fused_mbconv(x, w1, g1, be1, m1, v1, w2[0, 0], g2, be2, m2, v2,
                           eps=eps, compute_dtype=jnp.float32)
    out_f32 = jax.block_until_ready(out_f32)
    if not jnp.allclose(out_f32, ref, atol=2e-3, rtol=2e-3):
        err = float(jnp.max(jnp.abs(out_f32 - ref)))
        raise AssertionError(
            f"Pallas FusedMBConv (f32) mismatch vs JAX reference "
            f"(max abs err {err})")

    print("KERNEL_OK")
</pallas_src>

<mosaic_0001>
module attributes {stable_mosaic.version = 11 : i64} {
  func.func @fused_mbconv_kernel(%arg0: i32, %arg1: memref<2x16x128xf32, #tpu.memory_space<vmem>>, %arg2: memref<3x128x512xbf16, #tpu.memory_space<vmem>>, %arg3: memref<1x512xf32, #tpu.memory_space<vmem>>, %arg4: memref<512x128xbf16, #tpu.memory_space<vmem>>, %arg5: memref<1x128xf32, #tpu.memory_space<vmem>>, %arg6: memref<2x16x128xf32, #tpu.memory_space<vmem>>) attributes {dimension_semantics = [#tpu.dimension_semantics<parallel>], iteration_bounds = array<i64: 1>, scalar_prefetch = 0 : i64, scratch_operands = 0 : i64, tpu.core_type = #tpu.core_type<tc>, window_params = [{transform_indices = @transform_0, window_bounds = array<i64: 2, 16, 128>}, {pipeline_mode = #tpu.pipeline_mode<synchronous>, transform_indices = @transform_1, window_bounds = array<i64: 3, 128, 512>}, {pipeline_mode = #tpu.pipeline_mode<synchronous>, transform_indices = @transform_2, window_bounds = array<i64: 1, 512>}, {pipeline_mode = #tpu.pipeline_mode<synchronous>, transform_indices = @transform_3, window_bounds = array<i64: 512, 128>}, {pipeline_mode = #tpu.pipeline_mode<synchronous>, transform_indices = @transform_4, window_bounds = array<i64: 1, 128>}, {transform_indices = @transform_5, window_bounds = array<i64: 2, 16, 128>}]} {
    %c0 = arith.constant 0 : index
    %c0_0 = arith.constant 0 : index
    %c0_1 = arith.constant 0 : index
    %0 = vector.load %arg1[%c0, %c0_0, %c0_1] : memref<2x16x128xf32, #tpu.memory_space<vmem>>, vector<2x16x128xf32>
    %1 = arith.truncf %0 : vector<2x16x128xf32> to vector<2x16x128xbf16>
    %cst = arith.constant 0.000000e+00 : bf16
    %2 = vector.broadcast %cst : bf16 to vector<2x1x128xbf16>
    %3 = vector.extract_strided_slice %1 {offsets = [0, 0, 0], sizes = [2, 15, 128], strides = [1, 1, 1]} : vector<2x16x128xbf16> to vector<2x15x128xbf16>
    %4 = tpu.concatenate %2, %3 in 1 : vector<2x1x128xbf16>, vector<2x15x128xbf16> -> vector<2x16x128xbf16>
    %5 = vector.shape_cast %4 : vector<2x16x128xbf16> to vector<32x128xbf16>
    %c0_2 = arith.constant 0 : index
    %c0_3 = arith.constant 0 : index
    %c0_4 = arith.constant 0 : index
    %6 = vector.load %arg2[%c0_2, %c0_3, %c0_4] : memref<3x128x512xbf16, #tpu.memory_space<vmem>>, vector<1x128x512xbf16>
    %7 = vector.shape_cast %6 : vector<1x128x512xbf16> to vector<128x512xbf16>
    %cst_5 = arith.constant dense<0.000000e+00> : vector<32x512xf32>
    %8 = tpu.matmul %5, %7, %cst_5 {dimension_numbers = #tpu.dot_dimension_numbers<[1], [0], [0], [1], [0, 0, 1, 1], [], []>} : vector<32x128xbf16>, vector<128x512xbf16>, vector<32x512xf32> -> vector<32x512xf32>
    %9 = vector.shape_cast %1 : vector<2x16x128xbf16> to vector<32x128xbf16>
    %c1 = arith.constant 1 : index
    %c0_6 = arith.constant 0 : index
    %c0_7 = arith.constant 0 : index
    %10 = vector.load %arg2[%c1, %c0_6, %c0_7] : memref<3x128x512xbf16, #tpu.memory_space<vmem>>, vector<1x128x512xbf16>
    %11 = vector.shape_cast %10 : vector<1x128x512xbf16> to vector<128x512xbf16>
    %cst_8 = arith.constant dense<0.000000e+00> : vector<32x512xf32>
    %12 = tpu.matmul %9, %11, %cst_8 {dimension_numbers = #tpu.dot_dimension_numbers<[1], [0], [0], [1], [0, 0, 1, 1], [], []>} : vector<32x128xbf16>, vector<128x512xbf16>, vector<32x512xf32> -> vector<32x512xf32>
    %13 = arith.addf %8, %12 : vector<32x512xf32>
    %cst_9 = arith.constant 0.000000e+00 : bf16
    %14 = vector.broadcast %cst_9 : bf16 to vector<2x1x128xbf16>
    %15 = vector.extract_strided_slice %1 {offsets = [0, 1, 0], sizes = [2, 15, 128], strides = [1, 1, 1]} : vector<2x16x128xbf16> to vector<2x15x128xbf16>
    %16 = tpu.concatenate %15, %14 in 1 : vector<2x15x128xbf16>, vector<2x1x128xbf16> -> vector<2x16x128xbf16>
    %17 = vector.shape_cast %16 : vector<2x16x128xbf16> to vector<32x128xbf16>
    %c2 = arith.constant 2 : index
    %c0_10 = arith.constant 0 : index
    %c0_11 = arith.constant 0 : index
    %18 = vector.load %arg2[%c2, %c0_10, %c0_11] : memref<3x128x512xbf16, #tpu.memory_space<vmem>>, vector<1x128x512xbf16>
    %19 = vector.shape_cast %18 : vector<1x128x512xbf16> to vector<128x512xbf16>
    %cst_12 = arith.constant dense<0.000000e+00> : vector<32x512xf32>
    %20 = tpu.matmul %17, %19, %cst_12 {dimension_numbers = #tpu.dot_dimension_numbers<[1], [0], [0], [1], [0, 0, 1, 1], [], []>} : vector<32x128xbf16>, vector<128x512xbf16>, vector<32x512xf32> -> vector<32x512xf32>
    %21 = arith.addf %13, %20 : vector<32x512xf32>
    %c0_13 = arith.constant 0 : index
    %c0_14 = arith.constant 0 : index
    %22 = vector.load %arg3[%c0_13, %c0_14] : memref<1x512xf32, #tpu.memory_space<vmem>>, vector<1x512xf32>
    %23 = vector.broadcast %22 : vector<1x512xf32> to vector<32x512xf32>
    %24 = arith.addf %21, %23 : vector<32x512xf32>
    %25 = arith.negf %24 : vector<32x512xf32>
    %26 = math.exp %25 : vector<32x512xf32>
    %cst_15 = arith.constant 1.000000e+00 : f32
    %27 = vector.broadcast %cst_15 : f32 to vector<32x512xf32>
    %28 = arith.addf %27, %26 : vector<32x512xf32>
    %29 = arith.divf %27, %28 : vector<32x512xf32>
    %30 = arith.mulf %24, %29 : vector<32x512xf32>
    %31 = arith.truncf %30 : vector<32x512xf32> to vector<32x512xbf16>
    %c0_16 = arith.constant 0 : index
    %c0_17 = arith.constant 0 : index
    %32 = vector.load %arg4[%c0_16, %c0_17] : memref<512x128xbf16, #tpu.memory_space<vmem>>, vector<512x128xbf16>
    %cst_18 = arith.constant dense<0.000000e+00> : vector<32x128xf32>
    %33 = tpu.matmul %31, %32, %cst_18 {dimension_numbers = #tpu.dot_dimension_numbers<[1], [0], [0], [1], [0, 0, 1, 1], [], []>} : vector<32x512xbf16>, vector<512x128xbf16>, vector<32x128xf32> -> vector<32x128xf32>
    %c0_19 = arith.constant 0 : index
    %c0_20 = arith.constant 0 : index
    %34 = vector.load %arg5[%c0_19, %c0_20] : memref<1x128xf32, #tpu.memory_space<vmem>>, vector<1x128xf32>
    %35 = vector.broadcast %34 : vector<1x128xf32> to vector<32x128xf32>
    %36 = arith.addf %33, %35 : vector<32x128xf32>
    %37 = vector.shape_cast %36 : vector<32x128xf32> to vector<2x16x128xf32>
    %38 = arith.addf %37, %0 : vector<2x16x128xf32>
    %c0_21 = arith.constant 0 : index
    %c0_22 = arith.constant 0 : index
    %c0_23 = arith.constant 0 : index
    %39 = vector.load %arg6[%c0_21, %c0_22, %c0_23] : memref<2x16x128xf32, #tpu.memory_space<vmem>>, vector<2x16x128xf32>
    tpu.vector_store %arg6[%c0_21, %c0_22, %c0_23], %38 {strides = array<i32>} : memref<2x16x128xf32, #tpu.memory_space<vmem>>, vector<2x16x128xf32>,
    return
  }
  func.func @transform_0(%arg0: i32) -> (i32, i32, i32) {
    %c0_i32 = arith.constant 0 : i32
    %c0_i32_0 = arith.constant 0 : i32
    %c0_i32_1 = arith.constant 0 : i32
    return %arg0, %c0_i32, %c0_i32_0 : i32, i32, i32
  }
  func.func @transform_1(%arg0: i32) -> (i32, i32, i32) {
    %c0_i32 = arith.constant 0 : i32
    %c0_i32_0 = arith.constant 0 : i32
    %c0_i32_1 = arith.constant 0 : i32
    %c0_i32_2 = arith.constant 0 : i32
    return %c0_i32, %c0_i32_0, %c0_i32_1 : i32, i32, i32
  }
  func.func @transform_2(%arg0: i32) -> (i32, i32) {
    %c0_i32 = arith.constant 0 : i32
    %c0_i32_0 = arith.constant 0 : i32
    %c0_i32_1 = arith.constant 0 : i32
    return %c0_i32, %c0_i32_0 : i32, i32
  }
  func.func @transform_3(%arg0: i32) -> (i32, i32) {
    %c0_i32 = arith.constant 0 : i32
    %c0_i32_0 = arith.constant 0 : i32
    %c0_i32_1 = arith.constant 0 : i32
    return %c0_i32, %c0_i32_0 : i32, i32
  }
  func.func @transform_4(%arg0: i32) -> (i32, i32) {
    %c0_i32 = arith.constant 0 : i32
    %c0_i32_0 = arith.constant 0 : i32
    %c0_i32_1 = arith.constant 0 : i32
    return %c0_i32, %c0_i32_0 : i32, i32
  }
  func.func @transform_5(%arg0: i32) -> (i32, i32, i32) {
    %c0_i32 = arith.constant 0 : i32
    %c0_i32_0 = arith.constant 0 : i32
    %c0_i32_1 = arith.constant 0 : i32
    return %arg0, %c0_i32, %c0_i32_0 : i32, i32, i32
  }
}

</mosaic_0001>

<llo_original>
// kernel: tpu_custom_call.1
$region0: #{tpu_custom_call.1}
  #allocation0 [shape = 'u32[]', space=smem, size = 0x4, offset = 0x4, fixed_abs, tag = 'smem constant byte address 0x4 - core index']
  #allocation1 [shape = 'u32[144,128]{1,0:T(1,128)}', space=vmem, size = 0x12000, scoped, tag = 'internal scratch']
  %s0 = inlined_call_operand.hbm [shape: f32[2,16,128], index: 0, kind: input, shape index: {}]
  %s1 = inlined_call_operand.hbm [shape: bf16[3,128,512], index: 1, kind: input, shape index: {}]
  %s2 = inlined_call_operand.vmem [shape: f32[1,512], index: 2, kind: input, shape index: {}]
  %s3 = inlined_call_operand.hbm [shape: bf16[512,128], index: 3, kind: input, shape index: {}]
  %s4 = inlined_call_operand.vmem [shape: f32[1,128], index: 4, kind: input, shape index: {}]
  %s5 = inlined_call_operand.hbm [shape: f32[2,16,128], index: 5, kind: output, shape index: {}]
  %s6 = sld [smem:[#allocation0]]
  $region42: #{tpu_custom_call.1} parent=0
    _
  %s8 = ssub.s32 1, %s6
  %s9 = scalar_select 0, %s8, %s6
  $region1: #{tpu_custom_call.1} parent=0
    #allocation2 [shape = 'u8[16384]{0}', space=vmem, size = 0x4000, scoped, tag = 'input window, operand 0, single buffered']
    #allocation3 [shape = 's32[1]{0}', space=sflag, size = 0x4, scoped, tag = 'scoped memory for tpu_custom_call.1']
    #allocation4 [shape = 's32[1]{0}', space=sflag, size = 0x4, scoped, tag = 'scoped memory for tpu_custom_call.1']
    #allocation5 [shape = 'u8[393216]{0}', space=vmem, size = 0x60000, scoped, tag = 'input window, operand 1, single buffered']
    #allocation6 [shape = 's32[1]{0}', space=sflag, size = 0x4, scoped, tag = 'scoped memory for tpu_custom_call.1']
    #allocation7 [shape = 'u8[131072]{0}', space=vmem, size = 0x20000, scoped, tag = 'input window, operand 3, single buffered']
    #allocation8 [shape = 'u8[16384]{0}', space=vmem, size = 0x4000, scoped, tag = 'output window, operand 0, single buffered']
    %10 = vsyncpa [#allocation3], 0
    %11 = vsyncpa [#allocation6], 0
    %12 = vsyncpa [#allocation4], 0
    // Predicated region
    $region2: #{tpu_custom_call.1} parent=1 // pred_check
      _
    $region3: #{tpu_custom_call.1} parent=1 // pred_check_branch
      %14 = sbr.rel (0) target = $region5
    $region4: #{tpu_custom_call.1} parent=1 // pred_region
      %s16 = ssub.s32 512, 512
      %17 = vsyncadd [#allocation3], %s16
      %s18 = sshll.u32 [#allocation2], 4
      %s19 = int_to_ptr.vmem [resolvable:$true] %s18
      %24 = dma.hbm_to_vmem [thread:$0]  %s0, 512, %s19, [#allocation3], 128, 128, 8
    $region5: #{tpu_custom_call.1} parent=1 // pred_fallthru
      _
    // Predicated region
    $region6: #{tpu_custom_call.1} parent=1 // pred_check
      _
    $region7: #{tpu_custom_call.1} parent=1 // pred_check_branch
      %26 = sbr.rel (0) target = $region9
    $region8: #{tpu_custom_call.1} parent=1 // pred_region
      %s28 = ssub.s32 12288, 12288
      %29 = vsyncadd [#allocation6], %s28
      %s30 = sshll.u32 [#allocation5], 4
      %s31 = int_to_ptr.vmem [resolvable:$true] %s30
      %36 = dma.hbm_to_vmem [thread:$0]  %s1, 12288, %s31, [#allocation6], 256, 256, 16
    $region9: #{tpu_custom_call.1} parent=1 // pred_fallthru
      _
    // Predicated region
    $region10: #{tpu_custom_call.1} parent=1 // pred_check
      _
    $region11: #{tpu_custom_call.1} parent=1 // pred_check_branch
      %38 = sbr.rel (0) target = $region13
    $region12: #{tpu_custom_call.1} parent=1 // pred_region
      _
    $region13: #{tpu_custom_call.1} parent=1 // pred_fallthru
      _
    // Predicated region
    $region14: #{tpu_custom_call.1} parent=1 // pred_check
      _
    $region15: #{tpu_custom_call.1} parent=1 // pred_check_branch
      %40 = sbr.rel (0) target = $region17
    $region16: #{tpu_custom_call.1} parent=1 // pred_region
      %s42 = ssub.s32 4096, 4096
      %43 = vsyncadd [#allocation6], %s42
      %s44 = sshll.u32 [#allocation7], 4
      %s45 = int_to_ptr.vmem [resolvable:$true] %s44
      %50 = dma.hbm_to_vmem [thread:$0]  %s3, 4096, %s45, [#allocation6], 64, 64, 4
    $region17: #{tpu_custom_call.1} parent=1 // pred_fallthru
      _
    // Predicated region
    $region18: #{tpu_custom_call.1} parent=1 // pred_check
      _
    $region19: #{tpu_custom_call.1} parent=1 // pred_check_branch
      %52 = sbr.rel (0) target = $region21
    $region20: #{tpu_custom_call.1} parent=1 // pred_region
      _
    $region21: #{tpu_custom_call.1} parent=1 // pred_fallthru
      _
    // Predicated region
    $region22: #{tpu_custom_call.1} parent=1 // pred_check
      _
    $region23: #{tpu_custom_call.1} parent=1 // pred_check_branch
      %54 = sbr.rel (0) target = $region25
    $region24: #{tpu_custom_call.1} parent=1 // pred_region
      %55 = dma.done [#allocation3], 512
    $region25: #{tpu_custom_call.1} parent=1 // pred_fallthru
      _
    // Predicated region
    $region26: #{tpu_custom_call.1} parent=1 // pred_check
      _
    $region27: #{tpu_custom_call.1} parent=1 // pred_check_branch
      %57 = sbr.rel (0) target = $region29
    $region28: #{tpu_custom_call.1} parent=1 // pred_region
      %58 = dma.done [#allocation6], 12288
    $region29: #{tpu_custom_call.1} parent=1 // pred_fallthru
      _
    // Predicated region
    $region30: #{tpu_custom_call.1} parent=1 // pred_check
      _
    $region31: #{tpu_custom_call.1} parent=1 // pred_check_branch
      %60 = sbr.rel (0) target = $region33
    $region32: #{tpu_custom_call.1} parent=1 // pred_region
      %61 = dma.done [#allocation6], 4096
    $region33: #{tpu_custom_call.1} parent=1 // pred_fallthru
      _
    %v63 = vld [vmem:[#allocation2] sm:$0xff]
    %v64 = vld [vmem:[#allocation2 + $0x8] sm:$0xff]
    %v65 = vld [vmem:[#allocation2 + $0x10] sm:$0xff]
    %v66 = vld [vmem:[#allocation2 + $0x18] sm:$0xff]
    %v67 = vpack.c.bf16 %v64, %v63
    %v68 = vpack.c.bf16 %v66, %v65
    %v70 = vshrl.u32 %v67, 16
    %v72 = vrot.slane %v70, 7
    %v73 = vshll.u32 %v67, 16
    %v75 = vor.u32 %v72, %v73
    %v77 = vshrl.u32 %v68, 16
    %v79 = vrot.slane %v77, 7
    %v80 = vshll.u32 %v68, 16
    %v82 = vor.u32 %v79, %v80
    %vm85 = vcmask 1040384
    %vm86 = vsmask.f32 256
    %vm87 = vmand %vm85, %vm86
    %v88 = vsel %vm87, 0, %v75
    %v89 = vsel %vm87, 0, %v82
    %v90 = vld [vmem:[#allocation5] sm:$0xff]
    %v91 = vld [vmem:[#allocation5 + $0x8] sm:$0xff]
    %v92 = vld [vmem:[#allocation5 + $0x10] sm:$0xff]
    %v93 = vld [vmem:[#allocation5 + $0x18] sm:$0xff]
    %v94 = vld [vmem:[#allocation5 + $0x20] sm:$0xff]
    %v95 = vld [vmem:[#allocation5 + $0x28] sm:$0xff]
    %v96 = vld [vmem:[#allocation5 + $0x30] sm:$0xff]
    %v97 = vld [vmem:[#allocation5 + $0x38] sm:$0xff]
    %v98 = vld [vmem:[#allocation5 + $0x40] sm:$0xff]
    %v99 = vld [vmem:[#allocation5 + $0x48] sm:$0xff]
    %v100 = vld [vmem:[#allocation5 + $0x50] sm:$0xff]
    %v101 = vld [vmem:[#allocation5 + $0x58] sm:$0xff]
    %v102 = vld [vmem:[#allocation5 + $0x60] sm:$0xff]
    %v103 = vld [vmem:[#allocation5 + $0x68] sm:$0xff]
    %v104 = vld [vmem:[#allocation5 + $0x70] sm:$0xff]
    %v105 = vld [vmem:[#allocation5 + $0x78] sm:$0xff]
    %v106 = vld [vmem:[#allocation5 + $0x80] sm:$0xff]
    %v107 = vld [vmem:[#allocation5 + $0x88] sm:$0xff]
    %v108 = vld [vmem:[#allocation5 + $0x90] sm:$0xff]
    %v109 = vld [vmem:[#allocation5 + $0x98] sm:$0xff]
    %v110 = vld [vmem:[#allocation5 + $0xa0] sm:$0xff]
    %v111 = vld [vmem:[#allocation5 + $0xa8] sm:$0xff]
    %v112 = vld [vmem:[#allocation5 + $0xb0] sm:$0xff]
    %v113 = vld [vmem:[#allocation5 + $0xb8] sm:$0xff]
    %v114 = vld [vmem:[#allocation5 + $0xc0] sm:$0xff]
    %v115 = vld [vmem:[#allocation5 + $0xc8] sm:$0xff]
    %v116 = vld [vmem:[#allocation5 + $0xd0] sm:$0xff]
    %v117 = vld [vmem:[#allocation5 + $0xd8] sm:$0xff]
    %v118 = vld [vmem:[#allocation5 + $0xe0] sm:$0xff]
    %v119 = vld [vmem:[#allocation5 + $0xe8] sm:$0xff]
    %v120 = vld [vmem:[#allocation5 + $0xf0] sm:$0xff]
    %v121 = vld [vmem:[#allocation5 + $0xf8] sm:$0xff]
    %s122 = scalar_lea.vmem [#allocation5], 256
    %v123 = vld [vmem:[%s122] sm:$0xff]
    %v124 = vld [vmem:[%s122 + $0x8] sm:$0xff]
    %v125 = vld [vmem:[%s122 + $0x10] sm:$0xff]
    %v126 = vld [vmem:[%s122 + $0x18] sm:$0xff]
    %v127 = vld [vmem:[%s122 + $0x20] sm:$0xff]
    %v128 = vld [vmem:[%s122 + $0x28] sm:$0xff]
    %v129 = vld [vmem:[%s122 + $0x30] sm:$0xff]
    %v130 = vld [vmem:[%s122 + $0x38] sm:$0xff]
    %v131 = vld [vmem:[%s122 + $0x40] sm:$0xff]
    %v132 = vld [vmem:[%s122 + $0x48] sm:$0xff]
    %v133 = vld [vmem:[%s122 + $0x50] sm:$0xff]
    %v134 = vld [vmem:[%s122 + $0x58] sm:$0xff]
    %v135 = vld [vmem:[%s122 + $0x60] sm:$0xff]
    %v136 = vld [vmem:[%s122 + $0x68] sm:$0xff]
    %v137 = vld [vmem:[%s122 + $0x70] sm:$0xff]
    %v138 = vld [vmem:[%s122 + $0x78] sm:$0xff]
    %v139 = vld [vmem:[%s122 + $0x80] sm:$0xff]
    %v140 = vld [vmem:[%s122 + $0x88] sm:$0xff]
    %v141 = vld [vmem:[%s122 + $0x90] sm:$0xff]
    %v142 = vld [vmem:[%s122 + $0x98] sm:$0xff]
    %v143 = vld [vmem:[%s122 + $0xa0] sm:$0xff]
    %v144 = vld [vmem:[%s122 + $0xa8] sm:$0xff]
    %v145 = vld [vmem:[%s122 + $0xb0] sm:$0xff]
    %v146 = vld [vmem:[%s122 + $0xb8] sm:$0xff]
    %v147 = vld [vmem:[%s122 + $0xc0] sm:$0xff]
    %v148 = vld [vmem:[%s122 + $0xc8] sm:$0xff]
    %v149 = vld [vmem:[%s122 + $0xd0] sm:$0xff]
    %v150 = vld [vmem:[%s122 + $0xd8] sm:$0xff]
    %v151 = vld [vmem:[%s122 + $0xe0] sm:$0xff]
    %v152 = vld [vmem:[%s122 + $0xe8] sm:$0xff]
    %v153 = vld [vmem:[%s122 + $0xf0] sm:$0xff]
    %v154 = vld [vmem:[%s122 + $0xf8] sm:$0xff]
    %v187 = vunpack.c.l.b16 %v123
    %v188 = vunpack.c.h.b16 %v123
    %v189 = vunpack.c.l.b16 %v124
    %v190 = vunpack.c.h.b16 %v124
    %v191 = vunpack.c.l.b16 %v125
    %v192 = vunpack.c.h.b16 %v125
    %v193 = vunpack.c.l.b16 %v126
    %v194 = vunpack.c.h.b16 %v126
    %v195 = vunpack.c.l.b16 %v127
    %v196 = vunpack.c.h.b16 %v127
    %v197 = vunpack.c.l.b16 %v128
    %v198 = vunpack.c.h.b16 %v128
    %v199 = vunpack.c.l.b16 %v129
    %v200 = vunpack.c.h.b16 %v129
    %v201 = vunpack.c.l.b16 %v130
    %v202 = vunpack.c.h.b16 %v130
    %v203 = vunpack.c.l.b16 %v131
    %v204 = vunpack.c.h.b16 %v131
    %v205 = vunpack.c.l.b16 %v132
    %v206 = vunpack.c.h.b16 %v132
    %v207 = vunpack.c.l.b16 %v133
    %v208 = vunpack.c.h.b16 %v133
    %v209 = vunpack.c.l.b16 %v134
    %v210 = vunpack.c.h.b16 %v134
    %v211 = vunpack.c.l.b16 %v135
    %v212 = vunpack.c.h.b16 %v135
    %v213 = vunpack.c.l.b16 %v136
    %v214 = vunpack.c.h.b16 %v136
    %v215 = vunpack.c.l.b16 %v137
    %v216 = vunpack.c.h.b16 %v137
    %v217 = vunpack.c.l.b16 %v138
    %v218 = vunpack.c.h.b16 %v138
    %v219 = vunpack.c.l.b16 %v139
    %v220 = vunpack.c.h.b16 %v139
    %v221 = vunpack.c.l.b16 %v140
    %v222 = vunpack.c.h.b16 %v140
    %v223 = vunpack.c.l.b16 %v141
    %v224 = vunpack.c.h.b16 %v141
    %v225 = vunpack.c.l.b16 %v142
    %v226 = vunpack.c.h.b16 %v142
    %v227 = vunpack.c.l.b16 %v143
    %v228 = vunpack.c.h.b16 %v143
    %v229 = vunpack.c.l.b16 %v144
    %v230 = vunpack.c.h.b16 %v144
    %v231 = vunpack.c.l.b16 %v145
    %v232 = vunpack.c.h.b16 %v145
    %v233 = vunpack.c.l.b16 %v146
    %v234 = vunpack.c.h.b16 %v146
    %v235 = vunpack.c.l.b16 %v147
    %v236 = vunpack.c.h.b16 %v147
    %v237 = vunpack.c.l.b16 %v148
    %v238 = vunpack.c.h.b16 %v148
    %v239 = vunpack.c.l.b16 %v149
    %v240 = vunpack.c.h.b16 %v149
    %v241 = vunpack.c.l.b16 %v150
    %v242 = vunpack.c.h.b16 %v150
    %v243 = vunpack.c.l.b16 %v151
    %v244 = vunpack.c.h.b16 %v151
    %v245 = vunpack.c.l.b16 %v152
    %v246 = vunpack.c.h.b16 %v152
    %v247 = vunpack.c.l.b16 %v153
    %v248 = vunpack.c.h.b16 %v153
    %v249 = vunpack.c.l.b16 %v154
    %v250 = vunpack.c.h.b16 %v154
    %v251 = vpack.c.b16 %v191, %v187
    %v252 = vpack.c.b16 %v192, %v188
    %v253 = vpack.c.b16 %v193, %v189
    %v254 = vpack.c.b16 %v194, %v190
    %v255 = vpack.c.b16 %v199, %v195
    %v256 = vpack.c.b16 %v200, %v196
    %v257 = vpack.c.b16 %v201, %v197
    %v258 = vpack.c.b16 %v202, %v198
    %v259 = vpack.c.b16 %v207, %v203
    %v260 = vpack.c.b16 %v208, %v204
    %v261 = vpack.c.b16 %v209, %v205
    %v262 = vpack.c.b16 %v210, %v206
    %v263 = vpack.c.b16 %v215, %v211
    %v264 = vpack.c.b16 %v216, %v212
    %v265 = vpack.c.b16 %v217, %v213
    %v266 = vpack.c.b16 %v218, %v214
    %v267 = vpack.c.b16 %v223, %v219
    %v268 = vpack.c.b16 %v224, %v220
    %v269 = vpack.c.b16 %v225, %v221
    %v270 = vpack.c.b16 %v226, %v222
    %v271 = vpack.c.b16 %v231, %v227
    %v272 = vpack.c.b16 %v232, %v228
    %v273 = vpack.c.b16 %v233, %v229
    %v274 = vpack.c.b16 %v234, %v230
    %v275 = vpack.c.b16 %v239, %v235
    %v276 = vpack.c.b16 %v240, %v236
    %v277 = vpack.c.b16 %v241, %v237
    %v278 = vpack.c.b16 %v242, %v238
    %v279 = vpack.c.b16 %v247, %v243
    %v280 = vpack.c.b16 %v248, %v244
    %v281 = vpack.c.b16 %v249, %v245
    %v282 = vpack.c.b16 %v250, %v246
    %315 = vmatprep.subr.bf16.mxu0 %v252
    %316 = vmatpush1.bf16.msra.mxu0 %v251
    %317 = vmatprep.subr.bf16.mxu0 %v256
    %318 = vmatpush1.bf16.msra.mxu0 %v255
    %319 = vmatprep.subr.bf16.mxu0 %v260
    %320 = vmatpush1.bf16.msra.mxu0 %v259
    %321 = vmatprep.subr.bf16.mxu0 %v264
    %322 = vmatpush1.bf16.msra.mxu0 %v263
    %323 = vmatprep.subr.bf16.mxu0 %v268
    %324 = vmatpush1.bf16.msra.mxu0 %v267
    %325 = vmatprep.subr.bf16.mxu0 %v272
    %326 = vmatpush1.bf16.msra.mxu0 %v271
    %327 = vmatprep.subr.bf16.mxu0 %v276
    %328 = vmatpush1.bf16.msra.mxu0 %v275
    %329 = vmatprep.subr.bf16.mxu0 %v280
    %330 = vmatpush1.bf16.msra.mxu0 %v279
    %331 = vmatprep.subr.bf16.mxu0 0
    %332 = vmatpush1.bf16.msra.mxu0 0
    %333 = vmatprep.subr.bf16.mxu0 0
    %334 = vmatpush1.bf16.msra.mxu0 0
    %335 = vmatprep.subr.bf16.mxu0 0
    %336 = vmatpush1.bf16.msra.mxu0 0
    %337 = vmatprep.subr.bf16.mxu0 0
    %338 = vmatpush1.bf16.msra.mxu0 0
    %339 = vmatprep.subr.bf16.mxu0 0
    %340 = vmatpush1.bf16.msra.mxu0 0
    %341 = vmatprep.subr.bf16.mxu0 0
    %342 = vmatpush1.bf16.msra.mxu0 0
    %343 = vmatprep.subr.bf16.mxu0 0
    %344 = vmatpush1.bf16.msra.mxu0 0
    %345 = vmatprep.subr.bf16.mxu0 0
    %346 = vmatpush1.bf16.msra.mxu0 0
    %347 = vmatprep.mubr.bf16.mxu0 0
    %348 = vmatmul.mubr.bf16.gmra.mrb[0].mxu0 %v67
    %v349 = vpop.f32.mrb[0].mxu0
    %v350 = vadd.f32 0.0, %v349
    %v351 = vpop.f32.mrb[0].mxu0
    %v352 = vadd.f32 0.0, %v351
    %v353 = vpop.f32.mrb[0].mxu0
    %v354 = vadd.f32 0.0, %v353
    %v355 = vpop.f32.mrb[0].mxu0
    %v356 = vadd.f32 0.0, %v355
    %357 = vmatprep.mubr.bf16.mxu0 0
    %358 = vmatmul.mubr.bf16.gmra.mrb[0].mxu0 %v68
    %v359 = vpop.f32.mrb[0].mxu0
    %v360 = vadd.f32 0.0, %v359
    %v361 = vpop.f32.mrb[0].mxu0
    %v362 = vadd.f32 0.0, %v361
    %v363 = vpop.f32.mrb[0].mxu0
    %v364 = vadd.f32 0.0, %v363
    %v365 = vpop.f32.mrb[0].mxu0
    %v366 = vadd.f32 0.0, %v365
    %367 = vdwg.mxu0
    %368 = vmatprep.subr.bf16.mxu0 %v254
    %369 = vmatpush1.bf16.msra.mxu0 %v253
    %370 = vmatprep.subr.bf16.mxu0 %v258
    %371 = vmatpush1.bf16.msra.mxu0 %v257
    %372 = vmatprep.subr.bf16.mxu0 %v262
    %373 = vmatpush1.bf16.msra.mxu0 %v261
    %374 = vmatprep.subr.bf16.mxu0 %v266
    %375 = vmatpush1.bf16.msra.mxu0 %v265
    %376 = vmatprep.subr.bf16.mxu0 %v270
    %377 = vmatpush1.bf16.msra.mxu0 %v269
    %378 = vmatprep.subr.bf16.mxu0 %v274
    %379 = vmatpush1.bf16.msra.mxu0 %v273
    %380 = vmatprep.subr.bf16.mxu0 %v278
    %381 = vmatpush1.bf16.msra.mxu0 %v277
    %382 = vmatprep.subr.bf16.mxu0 %v282
    %383 = vmatpush1.bf16.msra.mxu0 %v281
    %384 = vmatprep.subr.bf16.mxu0 0
    %385 = vmatpush1.bf16.msra.mxu0 0
    %386 = vmatprep.subr.bf16.mxu0 0
    %387 = vmatpush1.bf16.msra.mxu0 0
    %388 = vmatprep.subr.bf16.mxu0 0
    %389 = vmatpush1.bf16.msra.mxu0 0
    %390 = vmatprep.subr.bf16.mxu0 0
    %391 = vmatpush1.bf16.msra.mxu0 0
    %392 = vmatprep.subr.bf16.mxu0 0
    %393 = vmatpush1.bf16.msra.mxu0 0
    %394 = vmatprep.subr.bf16.mxu0 0
    %395 = vmatpush1.bf16.msra.mxu0 0
    %396 = vmatprep.subr.bf16.mxu0 0
    %397 = vmatpush1.bf16.msra.mxu0 0
    %398 = vmatprep.subr.bf16.mxu0 0
    %399 = vmatpush1.bf16.msra.mxu0 0
    %400 = vmatprep.mubr.bf16.mxu0 0
    %401 = vmatmul.mubr.bf16.gmra.mrb[0].mxu0 %v67
    %v402 = vpop.f32.mrb[0].mxu0
    %v403 = vadd.f32 0.0, %v402
    %v404 = vpop.f32.mrb[0].mxu0
    %v405 = vadd.f32 0.0, %v404
    %v406 = vpop.f32.mrb[0].mxu0
    %v407 = vadd.f32 0.0, %v406
    %v408 = vpop.f32.mrb[0].mxu0
    %v409 = vadd.f32 0.0, %v408
    %410 = vmatprep.mubr.bf16.mxu0 0
    %411 = vmatmul.mubr.bf16.gmra.mrb[0].mxu0 %v68
    %v412 = vpop.f32.mrb[0].mxu0
    %v413 = vadd.f32 0.0, %v412
    %v414 = vpop.f32.mrb[0].mxu0
    %v415 = vadd.f32 0.0, %v414
    %v416 = vpop.f32.mrb[0].mxu0
    %v417 = vadd.f32 0.0, %v416
    %v418 = vpop.f32.mrb[0].mxu0
    %v419 = vadd.f32 0.0, %v418
    %420 = vdwg.mxu0
    %v453 = vunpack.c.l.b16 %v90
    %v454 = vunpack.c.h.b16 %v90
    %v455 = vunpack.c.l.b16 %v91
    %v456 = vunpack.c.h.b16 %v91
    %v457 = vunpack.c.l.b16 %v92
    %v458 = vunpack.c.h.b16 %v92
    %v459 = vunpack.c.l.b16 %v93
    %v460 = vunpack.c.h.b16 %v93
    %v461 = vunpack.c.l.b16 %v94
    %v462 = vunpack.c.h.b16 %v94
    %v463 = vunpack.c.l.b16 %v95
    %v464 = vunpack.c.h.b16 %v95
    %v465 = vunpack.c.l.b16 %v96
    %v466 = vunpack.c.h.b16 %v96
    %v467 = vunpack.c.l.b16 %v97
    %v468 = vunpack.c.h.b16 %v97
    %v469 = vunpack.c.l.b16 %v98
    %v470 = vunpack.c.h.b16 %v98
    %v471 = vunpack.c.l.b16 %v99
    %v472 = vunpack.c.h.b16 %v99
    %v473 = vunpack.c.l.b16 %v100
    %v474 = vunpack.c.h.b16 %v100
    %v475 = vunpack.c.l.b16 %v101
    %v476 = vunpack.c.h.b16 %v101
    %v477 = vunpack.c.l.b16 %v102
    %v478 = vunpack.c.h.b16 %v102
    %v479 = vunpack.c.l.b16 %v103
    %v480 = vunpack.c.h.b16 %v103
    %v481 = vunpack.c.l.b16 %v104
    %v482 = vunpack.c.h.b16 %v104
    %v483 = vunpack.c.l.b16 %v105
    %v484 = vunpack.c.h.b16 %v105
    %v485 = vunpack.c.l.b16 %v106
    %v486 = vunpack.c.h.b16 %v106
    %v487 = vunpack.c.l.b16 %v107
    %v488 = vunpack.c.h.b16 %v107
    %v489 = vunpack.c.l.b16 %v108
    %v490 = vunpack.c.h.b16 %v108
    %v491 = vunpack.c.l.b16 %v109
    %v492 = vunpack.c.h.b16 %v109
    %v493 = vunpack.c.l.b16 %v110
    %v494 = vunpack.c.h.b16 %v110
    %v495 = vunpack.c.l.b16 %v111
    %v496 = vunpack.c.h.b16 %v111
    %v497 = vunpack.c.l.b16 %v112
    %v498 = vunpack.c.h.b16 %v112
    %v499 = vunpack.c.l.b16 %v113
    %v500 = vunpack.c.h.b16 %v113
    %v501 = vunpack.c.l.b16 %v114
    %v502 = vunpack.c.h.b16 %v114
    %v503 = vunpack.c.l.b16 %v115
    %v504 = vunpack.c.h.b16 %v115
    %v505 = vunpack.c.l.b16 %v116
    %v506 = vunpack.c.h.b16 %v116
    %v507 = vunpack.c.l.b16 %v117
    %v508 = vunpack.c.h.b16 %v117
    %v509 = vunpack.c.l.b16 %v118
    %v510 = vunpack.c.h.b16 %v118
    %v511 = vunpack.c.l.b16 %v119
    %v512 = vunpack.c.h.b16 %v119
    %v513 = vunpack.c.l.b16 %v120
    %v514 = vunpack.c.h.b16 %v120
    %v515 = vunpack.c.l.b16 %v121
    %v516 = vunpack.c.h.b16 %v121
    %v517 = vpack.c.b16 %v457, %v453
    %v518 = vpack.c.b16 %v458, %v454
    %v519 = vpack.c.b16 %v459, %v455
    %v520 = vpack.c.b16 %v460, %v456
    %v521 = vpack.c.b16 %v465, %v461
    %v522 = vpack.c.b16 %v466, %v462
    %v523 = vpack.c.b16 %v467, %v463
    %v524 = vpack.c.b16 %v468, %v464
    %v525 = vpack.c.b16 %v473, %v469
    %v526 = vpack.c.b16 %v474, %v470
    %v527 = vpack.c.b16 %v475, %v471
    %v528 = vpack.c.b16 %v476, %v472
    %v529 = vpack.c.b16 %v481, %v477
    %v530 = vpack.c.b16 %v482, %v478
    %v531 = vpack.c.b16 %v483, %v479
    %v532 = vpack.c.b16 %v484, %v480
    %v533 = vpack.c.b16 %v489, %v485
    %v534 = vpack.c.b16 %v490, %v486
    %v535 = vpack.c.b16 %v491, %v487
    %v536 = vpack.c.b16 %v492, %v488
    %v537 = vpack.c.b16 %v497, %v493
    %v538 = vpack.c.b16 %v498, %v494
    %v539 = vpack.c.b16 %v499, %v495
    %v540 = vpack.c.b16 %v500, %v496
    %v541 = vpack.c.b16 %v505, %v501
    %v542 = vpack.c.b16 %v506, %v502
    %v543 = vpack.c.b16 %v507, %v503
    %v544 = vpack.c.b16 %v508, %v504
    %v545 = vpack.c.b16 %v513, %v509
    %v546 = vpack.c.b16 %v514, %v510
    %v547 = vpack.c.b16 %v515, %v511
    %v548 = vpack.c.b16 %v516, %v512
    %581 = vmatprep.subr.bf16.mxu0 %v518
    %582 = vmatpush1.bf16.msra.mxu0 %v517
    %583 = vmatprep.subr.bf16.mxu0 %v522
    %584 = vmatpush1.bf16.msra.mxu0 %v521
    %585 = vmatprep.subr.bf16.mxu0 %v526
    %586 = vmatpush1.bf16.msra.mxu0 %v525
    %587 = vmatprep.subr.bf16.mxu0 %v530
    %588 = vmatpush1.bf16.msra.mxu0 %v529
    %589 = vmatprep.subr.bf16.mxu0 %v534
    %590 = vmatpush1.bf16.msra.mxu0 %v533
    %591 = vmatprep.subr.bf16.mxu0 %v538
    %592 = vmatpush1.bf16.msra.mxu0 %v537
    %593 = vmatprep.subr.bf16.mxu0 %v542
    %594 = vmatpush1.bf16.msra.mxu0 %v541
    %595 = vmatprep.subr.bf16.mxu0 %v546
    %596 = vmatpush1.bf16.msra.mxu0 %v545
    %597 = vmatprep.subr.bf16.mxu0 0
    %598 = vmatpush1.bf16.msra.mxu0 0
    %599 = vmatprep.subr.bf16.mxu0 0
    %600 = vmatpush1.bf16.msra.mxu0 0
    %601 = vmatprep.subr.bf16.mxu0 0
    %602 = vmatpush1.bf16.msra.mxu0 0
    %603 = vmatprep.subr.bf16.mxu0 0
    %604 = vmatpush1.bf16.msra.mxu0 0
    %605 = vmatprep.subr.bf16.mxu0 0
    %606 = vmatpush1.bf16.msra.mxu0 0
    %607 = vmatprep.subr.bf16.mxu0 0
    %608 = vmatpush1.bf16.msra.mxu0 0
    %609 = vmatprep.subr.bf16.mxu0 0
    %610 = vmatpush1.bf16.msra.mxu0 0
    %611 = vmatprep.subr.bf16.mxu0 0
    %612 = vmatpush1.bf16.msra.mxu0 0
    %613 = vmatprep.mubr.bf16.mxu0 0
    %614 = vmatmul.mubr.bf16.gmra.mrb[0].mxu0 %v88
    %v615 = vpop.f32.mrb[0].mxu0
    %v616 = vadd.f32 %v350, %v615
    %v617 = vpop.f32.mrb[0].mxu0
    %v618 = vadd.f32 %v352, %v617
    %v619 = vpop.f32.mrb[0].mxu0
    %v620 = vadd.f32 %v354, %v619
    %v621 = vpop.f32.mrb[0].mxu0
    %v622 = vadd.f32 %v356, %v621
    %623 = vmatprep.mubr.bf16.mxu0 0
    %624 = vmatmul.mubr.bf16.gmra.mrb[0].mxu0 %v89
    %v625 = vpop.f32.mrb[0].mxu0
    %v626 = vadd.f32 %v360, %v625
    %v627 = vpop.f32.mrb[0].mxu0
    %v628 = vadd.f32 %v362, %v627
    %v629 = vpop.f32.mrb[0].mxu0
    %v630 = vadd.f32 %v364, %v629
    %v631 = vpop.f32.mrb[0].mxu0
    %v632 = vadd.f32 %v366, %v631
    %633 = vdwg.mxu0
    %634 = vmatprep.subr.bf16.mxu0 %v520
    %635 = vmatpush1.bf16.msra.mxu0 %v519
    %636 = vmatprep.subr.bf16.mxu0 %v524
    %637 = vmatpush1.bf16.msra.mxu0 %v523
    %638 = vmatprep.subr.bf16.mxu0 %v528
    %639 = vmatpush1.bf16.msra.mxu0 %v527
    %640 = vmatprep.subr.bf16.mxu0 %v532
    %641 = vmatpush1.bf16.msra.mxu0 %v531
    %642 = vmatprep.subr.bf16.mxu0 %v536
    %643 = vmatpush1.bf16.msra.mxu0 %v535
    %644 = vmatprep.subr.bf16.mxu0 %v540
    %645 = vmatpush1.bf16.msra.mxu0 %v539
    %646 = vmatprep.subr.bf16.mxu0 %v544
    %647 = vmatpush1.bf16.msra.mxu0 %v543
    %648 = vmatprep.subr.bf16.mxu0 %v548
    %649 = vmatpush1.bf16.msra.mxu0 %v547
    %650 = vmatprep.subr.bf16.mxu0 0
    %651 = vmatpush1.bf16.msra.mxu0 0
    %652 = vmatprep.subr.bf16.mxu0 0
    %653 = vmatpush1.bf16.msra.mxu0 0
    %654 = vmatprep.subr.bf16.mxu0 0
    %655 = vmatpush1.bf16.msra.mxu0 0
    %656 = vmatprep.subr.bf16.mxu0 0
    %657 = vmatpush1.bf16.msra.mxu0 0
    %658 = vmatprep.subr.bf16.mxu0 0
    %659 = vmatpush1.bf16.msra.mxu0 0
    %660 = vmatprep.subr.bf16.mxu0 0
    %661 = vmatpush1.bf16.msra.mxu0 0
    %662 = vmatprep.subr.bf16.mxu0 0
    %663 = vmatpush1.bf16.msra.mxu0 0
    %664 = vmatprep.subr.bf16.mxu0 0
    %665 = vmatpush1.bf16.msra.mxu0 0
    %666 = vmatprep.mubr.bf16.mxu0 0
    %667 = vmatmul.mubr.bf16.gmra.mrb[0].mxu0 %v88
    %v668 = vpop.f32.mrb[0].mxu0
    %v669 = vadd.f32 %v403, %v668
    %v670 = vpop.f32.mrb[0].mxu0
    %v671 = vadd.f32 %v405, %v670
    %v672 = vpop.f32.mrb[0].mxu0
    %v673 = vadd.f32 %v407, %v672
    %v674 = vpop.f32.mrb[0].mxu0
    %v675 = vadd.f32 %v409, %v674
    %676 = vmatprep.mubr.bf16.mxu0 0
    %677 = vmatmul.mubr.bf16.gmra.mrb[0].mxu0 %v89
    %v678 = vpop.f32.mrb[0].mxu0
    %v679 = vadd.f32 %v413, %v678
    %v680 = vpop.f32.mrb[0].mxu0
    %v681 = vadd.f32 %v415, %v680
    %v682 = vpop.f32.mrb[0].mxu0
    %v683 = vadd.f32 %v417, %v682
    %v684 = vpop.f32.mrb[0].mxu0
    %v685 = vadd.f32 %v419, %v684
    %686 = vdwg.mxu0
    %v687 = vrot.slane %v73, 1
    %v688 = vor.u32 %v70, %v687
    %v689 = vrot.slane %v80, 1
    %v690 = vor.u32 %v77, %v689
    %vm693 = vcmask 1047552
    %vm694 = vsmask.f32 7424
    %vm695 = vmand %vm693, %vm694
    %v696 = vsel %vm695, %v688, 0
    %v697 = vsel %vm695, %v690, 0
    %s698 = scalar_lea.vmem [#allocation5], 512
    %v699 = vld [vmem:[%s698] sm:$0xff]
    %v700 = vld [vmem:[%s698 + $0x8] sm:$0xff]
    %v701 = vld [vmem:[%s698 + $0x10] sm:$0xff]
    %v702 = vld [vmem:[%s698 + $0x18] sm:$0xff]
    %v703 = vld [vmem:[%s698 + $0x20] sm:$0xff]
    %v704 = vld [vmem:[%s698 + $0x28] sm:$0xff]
    %v705 = vld [vmem:[%s698 + $0x30] sm:$0xff]
    %v706 = vld [vmem:[%s698 + $0x38] sm:$0xff]
    %v707 = vld [vmem:[%s698 + $0x40] sm:$0xff]
    %v708 = vld [vmem:[%s698 + $0x48] sm:$0xff]
    %v709 = vld [vmem:[%s698 + $0x50] sm:$0xff]
    %v710 = vld [vmem:[%s698 + $0x58] sm:$0xff]
    %v711 = vld [vmem:[%s698 + $0x60] sm:$0xff]
    %v712 = vld [vmem:[%s698 + $0x68] sm:$0xff]
    %v713 = vld [vmem:[%s698 + $0x70] sm:$0xff]
    %v714 = vld [vmem:[%s698 + $0x78] sm:$0xff]
    %v715 = vld [vmem:[%s698 + $0x80] sm:$0xff]
    %v716 = vld [vmem:[%s698 + $0x88] sm:$0xff]
    %v717 = vld [vmem:[%s698 + $0x90] sm:$0xff]
    %v718 = vld [vmem:[%s698 + $0x98] sm:$0xff]
    %v719 = vld [vmem:[%s698 + $0xa0] sm:$0xff]
    %v720 = vld [vmem:[%s698 + $0xa8] sm:$0xff]
    %v721 = vld [vmem:[%s698 + $0xb0] sm:$0xff]
    %v722 = vld [vmem:[%s698 + $0xb8] sm:$0xff]
    %v723 = vld [vmem:[%s698 + $0xc0] sm:$0xff]
    %v724 = vld [vmem:[%s698 + $0xc8] sm:$0xff]
    %v725 = vld [vmem:[%s698 + $0xd0] sm:$0xff]
    %v726 = vld [vmem:[%s698 + $0xd8] sm:$0xff]
    %v727 = vld [vmem:[%s698 + $0xe0] sm:$0xff]
    %v728 = vld [vmem:[%s698 + $0xe8] sm:$0xff]
    %v729 = vld [vmem:[%s698 + $0xf0] sm:$0xff]
    %v730 = vld [vmem:[%s698 + $0xf8] sm:$0xff]
    %v763 = vunpack.c.l.b16 %v699
    %v764 = vunpack.c.h.b16 %v699
    %v765 = vunpack.c.l.b16 %v700
    %v766 = vunpack.c.h.b16 %v700
    %v767 = vunpack.c.l.b16 %v701
    %v768 = vunpack.c.h.b16 %v701
    %v769 = vunpack.c.l.b16 %v702
    %v770 = vunpack.c.h.b16 %v702
    %v771 = vunpack.c.l.b16 %v703
    %v772 = vunpack.c.h.b16 %v703
    %v773 = vunpack.c.l.b16 %v704
    %v774 = vunpack.c.h.b16 %v704
    %v775 = vunpack.c.l.b16 %v705
    %v776 = vunpack.c.h.b16 %v705
    %v777 = vunpack.c.l.b16 %v706
    %v778 = vunpack.c.h.b16 %v706
    %v779 = vunpack.c.l.b16 %v707
    %v780 = vunpack.c.h.b16 %v707
    %v781 = vunpack.c.l.b16 %v708
    %v782 = vunpack.c.h.b16 %v708
    %v783 = vunpack.c.l.b16 %v709
    %v784 = vunpack.c.h.b16 %v709
    %v785 = vunpack.c.l.b16 %v710
    %v786 = vunpack.c.h.b16 %v710
    %v787 = vunpack.c.l.b16 %v711
    %v788 = vunpack.c.h.b16 %v711
    %v789 = vunpack.c.l.b16 %v712
    %v790 = vunpack.c.h.b16 %v712
    %v791 = vunpack.c.l.b16 %v713
    %v792 = vunpack.c.h.b16 %v713
    %v793 = vunpack.c.l.b16 %v714
    %v794 = vunpack.c.h.b16 %v714
    %v795 = vunpack.c.l.b16 %v715
    %v796 = vunpack.c.h.b16 %v715
    %v797 = vunpack.c.l.b16 %v716
    %v798 = vunpack.c.h.b16 %v716
    %v799 = vunpack.c.l.b16 %v717
    %v800 = vunpack.c.h.b16 %v717
    %v801 = vunpack.c.l.b16 %v718
    %v802 = vunpack.c.h.b16 %v718
    %v803 = vunpack.c.l.b16 %v719
    %v804 = vunpack.c.h.b16 %v719
    %v805 = vunpack.c.l.b16 %v720
    %v806 = vunpack.c.h.b16 %v720
    %v807 = vunpack.c.l.b16 %v721
    %v808 = vunpack.c.h.b16 %v721
    %v809 = vunpack.c.l.b16 %v722
    %v810 = vunpack.c.h.b16 %v722
    %v811 = vunpack.c.l.b16 %v723
    %v812 = vunpack.c.h.b16 %v723
    %v813 = vunpack.c.l.b16 %v724
    %v814 = vunpack.c.h.b16 %v724
    %v815 = vunpack.c.l.b16 %v725
    %v816 = vunpack.c.h.b16 %v725
    %v817 = vunpack.c.l.b16 %v726
    %v818 = vunpack.c.h.b16 %v726
    %v819 = vunpack.c.l.b16 %v727
    %v820 = vunpack.c.h.b16 %v727
    %v821 = vunpack.c.l.b16 %v728
    %v822 = vunpack.c.h.b16 %v728
    %v823 = vunpack.c.l.b16 %v729
    %v824 = vunpack.c.h.b16 %v729
    %v825 = vunpack.c.l.b16 %v730
    %v826 = vunpack.c.h.b16 %v730
    %v827 = vpack.c.b16 %v767, %v763
    %v828 = vpack.c.b16 %v768, %v764
    %v829 = vpack.c.b16 %v769, %v765
    %v830 = vpack.c.b16 %v770, %v766
    %v831 = vpack.c.b16 %v775, %v771
    %v832 = vpack.c.b16 %v776, %v772
    %v833 = vpack.c.b16 %v777, %v773
    %v834 = vpack.c.b16 %v778, %v774
    %v835 = vpack.c.b16 %v783, %v779
    %v836 = vpack.c.b16 %v784, %v780
    %v837 = vpack.c.b16 %v785, %v781
    %v838 = vpack.c.b16 %v786, %v782
    %v839 = vpack.c.b16 %v791, %v787
    %v840 = vpack.c.b16 %v792, %v788
    %v841 = vpack.c.b16 %v793, %v789
    %v842 = vpack.c.b16 %v794, %v790
    %v843 = vpack.c.b16 %v799, %v795
    %v844 = vpack.c.b16 %v800, %v796
    %v845 = vpack.c.b16 %v801, %v797
    %v846 = vpack.c.b16 %v802, %v798
    %v847 = vpack.c.b16 %v807, %v803
    %v848 = vpack.c.b16 %v808, %v804
    %v849 = vpack.c.b16 %v809, %v805
    %v850 = vpack.c.b16 %v810, %v806
    %v851 = vpack.c.b16 %v815, %v811
    %v852 = vpack.c.b16 %v816, %v812
    %v853 = vpack.c.b16 %v817, %v813
    %v854 = vpack.c.b16 %v818, %v814
    %v855 = vpack.c.b16 %v823, %v819
    %v856 = vpack.c.b16 %v824, %v820
    %v857 = vpack.c.b16 %v825, %v821
    %v858 = vpack.c.b16 %v826, %v822
    %891 = vmatprep.subr.bf16.mxu0 %v828
    %892 = vmatpush1.bf16.msra.mxu0 %v827
    %893 = vmatprep.subr.bf16.mxu0 %v832
    %894 = vmatpush1.bf16.msra.mxu0 %v831
    %895 = vmatprep.subr.bf16.mxu0 %v836
    %896 = vmatpush1.bf16.msra.mxu0 %v835
    %897 = vmatprep.subr.bf16.mxu0 %v840
    %898 = vmatpush1.bf16.msra.mxu0 %v839
    %899 = vmatprep.subr.bf16.mxu0 %v844
    %900 = vmatpush1.bf16.msra.mxu0 %v843
    %901 = vmatprep.subr.bf16.mxu0 %v848
    %902 = vmatpush1.bf16.msra.mxu0 %v847
    %903 = vmatprep.subr.bf16.mxu0 %v852
    %904 = vmatpush1.bf16.msra.mxu0 %v851
    %905 = vmatprep.subr.bf16.mxu0 %v856
    %906 = vmatpush1.bf16.msra.mxu0 %v855
    %907 = vmatprep.subr.bf16.mxu0 0
    %908 = vmatpush1.bf16.msra.mxu0 0
    %909 = vmatprep.subr.bf16.mxu0 0
    %910 = vmatpush1.bf16.msra.mxu0 0
    %911 = vmatprep.subr.bf16.mxu0 0
    %912 = vmatpush1.bf16.msra.mxu0 0
    %913 = vmatprep.subr.bf16.mxu0 0
    %914 = vmatpush1.bf16.msra.mxu0 0
    %915 = vmatprep.subr.bf16.mxu0 0
    %916 = vmatpush1.bf16.msra.mxu0 0
    %917 = vmatprep.subr.bf16.mxu0 0
    %918 = vmatpush1.bf16.msra.mxu0 0
    %919 = vmatprep.subr.bf16.mxu0 0
    %920 = vmatpush1.bf16.msra.mxu0 0
    %921 = vmatprep.subr.bf16.mxu0 0
    %922 = vmatpush1.bf16.msra.mxu0 0
    %923 = vmatprep.mubr.bf16.mxu0 0
    %924 = vmatmul.mubr.bf16.gmra.mrb[0].mxu0 %v696
    %v925 = vpop.f32.mrb[0].mxu0
    %v926 = vadd.f32 0.0, %v925
    %v927 = vpop.f32.mrb[0].mxu0
    %v928 = vadd.f32 0.0, %v927
    %v929 = vpop.f32.mrb[0].mxu0
    %v930 = vadd.f32 0.0, %v929
    %v931 = vpop.f32.mrb[0].mxu0
    %v932 = vadd.f32 0.0, %v931
    %933 = vmatprep.mubr.bf16.mxu0 0
    %934 = vmatmul.mubr.bf16.gmra.mrb[0].mxu0 %v697
    %v935 = vpop.f32.mrb[0].mxu0
    %v936 = vadd.f32 0.0, %v935
    %v937 = vpop.f32.mrb[0].mxu0
    %v938 = vadd.f32 0.0, %v937
    %v939 = vpop.f32.mrb[0].mxu0
    %v940 = vadd.f32 0.0, %v939
    %v941 = vpop.f32.mrb[0].mxu0
    %v942 = vadd.f32 0.0, %v941
    %943 = vdwg.mxu0
    %944 = vmatprep.subr.bf16.mxu0 %v830
    %945 = vmatpush1.bf16.msra.mxu0 %v829
    %946 = vmatprep.subr.bf16.mxu0 %v834
    %947 = vmatpush1.bf16.msra.mxu0 %v833
    %948 = vmatprep.subr.bf16.mxu0 %v838
    %949 = vmatpush1.bf16.msra.mxu0 %v837
    %950 = vmatprep.subr.bf16.mxu0 %v842
    %951 = vmatpush1.bf16.msra.mxu0 %v841
    %952 = vmatprep.subr.bf16.mxu0 %v846
    %953 = vmatpush1.bf16.msra.mxu0 %v845
    %954 = vmatprep.subr.bf16.mxu0 %v850
    %955 = vmatpush1.bf16.msra.mxu0 %v849
    %956 = vmatprep.subr.bf16.mxu0 %v854
    %957 = vmatpush1.bf16.msra.mxu0 %v853
    %958 = vmatprep.subr.bf16.mxu0 %v858
    %959 = vmatpush1.bf16.msra.mxu0 %v857
    %960 = vmatprep.subr.bf16.mxu0 0
    %961 = vmatpush1.bf16.msra.mxu0 0
    %962 = vmatprep.subr.bf16.mxu0 0
    %963 = vmatpush1.bf16.msra.mxu0 0
    %964 = vmatprep.subr.bf16.mxu0 0
    %965 = vmatpush1.bf16.msra.mxu0 0
    %966 = vmatprep.subr.bf16.mxu0 0
    %967 = vmatpush1.bf16.msra.mxu0 0
    %968 = vmatprep.subr.bf16.mxu0 0
    %969 = vmatpush1.bf16.msra.mxu0 0
    %970 = vmatprep.subr.bf16.mxu0 0
    %971 = vmatpush1.bf16.msra.mxu0 0
    %972 = vmatprep.subr.bf16.mxu0 0
    %973 = vmatpush1.bf16.msra.mxu0 0
    %974 = vmatprep.subr.bf16.mxu0 0
    %975 = vmatpush1.bf16.msra.mxu0 0
    %976 = vmatprep.mubr.bf16.mxu0 0
    %977 = vmatmul.mubr.bf16.gmra.mrb[0].mxu0 %v696
    %v978 = vpop.f32.mrb[0].mxu0
    %v979 = vadd.f32 0.0, %v978
    %v980 = vpop.f32.mrb[0].mxu0
    %v981 = vadd.f32 0.0, %v980
    %v982 = vpop.f32.mrb[0].mxu0
    %v983 = vadd.f32 0.0, %v982
    %v984 = vpop.f32.mrb[0].mxu0
    %v985 = vadd.f32 0.0, %v984
    %986 = vmatprep.mubr.bf16.mxu0 0
    %987 = vmatmul.mubr.bf16.gmra.mrb[0].mxu0 %v697
    %v988 = vpop.f32.mrb[0].mxu0
    %v989 = vadd.f32 0.0, %v988
    %v990 = vpop.f32.mrb[0].mxu0
    %v991 = vadd.f32 0.0, %v990
    %v992 = vpop.f32.mrb[0].mxu0
    %v993 = vadd.f32 0.0, %v992
    %v994 = vpop.f32.mrb[0].mxu0
    %v995 = vadd.f32 0.0, %v994
    %996 = vdwg.mxu0
    %v997 = vadd.f32 %v616, %v926
    %v998 = vadd.f32 %v618, %v928
    %v999 = vadd.f32 %v669, %v979
    %v1000 = vadd.f32 %v671, %v981
    %v1001 = vadd.f32 %v620, %v930
    %v1002 = vadd.f32 %v622, %v932
    %v1003 = vadd.f32 %v673, %v983
    %v1004 = vadd.f32 %v675, %v985
    %v1005 = vadd.f32 %v626, %v936
    %v1006 = vadd.f32 %v628, %v938
    %v1007 = vadd.f32 %v679, %v989
    %v1008 = vadd.f32 %v681, %v991
    %v1009 = vadd.f32 %v630, %v940
    %v1010 = vadd.f32 %v632, %v942
    %v1011 = vadd.f32 %v683, %v993
    %v1012 = vadd.f32 %v685, %v995
    %v1013 = vld [vmem:[%s2] sm:$0xf]
    %v1015 = vlaneseq
    %v1016 = vshrl.u32 %v1015, 7
    %v1017 = vsub.s32 0, %v1016
    %v1018 = vrot.slane %v1013, %v1017
    %v1019 = vlaneseq
    %v1020 = vshrl.u32 %v1019, 7
    %v1021 = vsub.s32 1, %v1020
    %v1022 = vrot.slane %v1013, %v1021
    %v1023 = vlaneseq
    %v1024 = vshrl.u32 %v1023, 7
    %v1025 = vsub.s32 2, %v1024
    %v1026 = vrot.slane %v1013, %v1025
    %v1027 = vlaneseq
    %v1028 = vshrl.u32 %v1027, 7
    %v1029 = vsub.s32 3, %v1028
    %v1030 = vrot.slane %v1013, %v1029
    %v1035 = vadd.f32 %v997, %v1018
    %v1036 = vadd.f32 %v998, %v1022
    %v1037 = vadd.f32 %v999, %v1026
    %v1038 = vadd.f32 %v1000, %v1030
    %v1039 = vadd.f32 %v1001, %v1018
    %v1040 = vadd.f32 %v1002, %v1022
    %v1041 = vadd.f32 %v1003, %v1026
    %v1042 = vadd.f32 %v1004, %v1030
    %v1043 = vadd.f32 %v1005, %v1018
    %v1044 = vadd.f32 %v1006, %v1022
    %v1045 = vadd.f32 %v1007, %v1026
    %v1046 = vadd.f32 %v1008, %v1030
    %v1047 = vadd.f32 %v1009, %v1018
    %v1048 = vadd.f32 %v1010, %v1022
    %v1049 = vadd.f32 %v1011, %v1026
    %v1050 = vadd.f32 %v1012, %v1030
    %v1051 = vxor.u32 %v1035, 2147483648
    %v1052 = vxor.u32 %v1036, 2147483648
    %v1053 = vxor.u32 %v1037, 2147483648
    %v1054 = vxor.u32 %v1038, 2147483648
    %v1055 = vxor.u32 %v1039, 2147483648
    %v1056 = vxor.u32 %v1040, 2147483648
    %v1057 = vxor.u32 %v1041, 2147483648
    %v1058 = vxor.u32 %v1042, 2147483648
    %v1059 = vxor.u32 %v1043, 2147483648
    %v1060 = vxor.u32 %v1044, 2147483648
    %v1061 = vxor.u32 %v1045, 2147483648
    %v1062 = vxor.u32 %v1046, 2147483648
    %v1063 = vxor.u32 %v1047, 2147483648
    %v1064 = vxor.u32 %v1048, 2147483648
    %v1065 = vxor.u32 %v1049, 2147483648
    %v1066 = vxor.u32 %v1050, 2147483648
    %v1067 = vmul.f32 %v1051, 1.442695
    %v1068 = vpow.pop %v1067
    %v1069 = vmul.f32 %v1052, 1.442695
    %v1070 = vpow.pop %v1069
    %v1071 = vmul.f32 %v1053, 1.442695
    %v1072 = vpow.pop %v1071
    %v1073 = vmul.f32 %v1054, 1.442695
    %v1074 = vpow.pop %v1073
    %v1075 = vmul.f32 %v1055, 1.442695
    %v1076 = vpow.pop %v1075
    %v1077 = vmul.f32 %v1056, 1.442695
    %v1078 = vpow.pop %v1077
    %v1079 = vmul.f32 %v1057, 1.442695
    %v1080 = vpow.pop %v1079
    %v1081 = vmul.f32 %v1058, 1.442695
    %v1082 = vpow.pop %v1081
    %v1083 = vmul.f32 %v1059, 1.442695
    %v1084 = vpow.pop %v1083
    %v1085 = vmul.f32 %v1060, 1.442695
    %v1086 = vpow.pop %v1085
    %v1087 = vmul.f32 %v1061, 1.442695
    %v1088 = vpow.pop %v1087
    %v1089 = vmul.f32 %v1062, 1.442695
    %v1090 = vpow.pop %v1089
    %v1091 = vmul.f32 %v1063, 1.442695
    %v1092 = vpow.pop %v1091
    %v1093 = vmul.f32 %v1064, 1.442695
    %v1094 = vpow.pop %v1093
    %v1095 = vmul.f32 %v1065, 1.442695
    %v1096 = vpow.pop %v1095
    %v1097 = vmul.f32 %v1066, 1.442695
    %v1098 = vpow.pop %v1097
    %v1099 = vadd.f32 %v1068, 1.0
    %v1100 = vadd.f32 %v1070, 1.0
    %v1101 = vadd.f32 %v1072, 1.0
    %v1102 = vadd.f32 %v1074, 1.0
    %v1103 = vadd.f32 %v1076, 1.0
    %v1104 = vadd.f32 %v1078, 1.0
    %v1105 = vadd.f32 %v1080, 1.0
    %v1106 = vadd.f32 %v1082, 1.0
    %v1107 = vadd.f32 %v1084, 1.0
    %v1108 = vadd.f32 %v1086, 1.0
    %v1109 = vadd.f32 %v1088, 1.0
    %v1110 = vadd.f32 %v1090, 1.0
    %v1111 = vadd.f32 %v1092, 1.0
    %v1112 = vadd.f32 %v1094, 1.0
    %v1113 = vadd.f32 %v1096, 1.0
    %v1114 = vadd.f32 %v1098, 1.0
    %v1115 = vrcp.pop %v1099
    %v1116 = vmul.f32 1.0, %v1115
    %v1117 = vrcp.pop %v1100
    %v1118 = vmul.f32 1.0, %v1117
    %v1119 = vrcp.pop %v1101
    %v1120 = vmul.f32 1.0, %v1119
    %v1121 = vrcp.pop %v1102
    %v1122 = vmul.f32 1.0, %v1121
    %v1123 = vrcp.pop %v1103
    %v1124 = vmul.f32 1.0, %v1123
    %v1125 = vrcp.pop %v1104
    %v1126 = vmul.f32 1.0, %v1125
    %v1127 = vrcp.pop %v1105
    %v1128 = vmul.f32 1.0, %v1127
    %v1129 = vrcp.pop %v1106
    %v1130 = vmul.f32 1.0, %v1129
    %v1131 = vrcp.pop %v1107
    %v1132 = vmul.f32 1.0, %v1131
    %v1133 = vrcp.pop %v1108
    %v1134 = vmul.f32 1.0, %v1133
    %v1135 = vrcp.pop %v1109
    %v1136 = vmul.f32 1.0, %v1135
    %v1137 = vrcp.pop %v1110
    %v1138 = vmul.f32 1.0, %v1137
    %v1139 = vrcp.pop %v1111
    %v1140 = vmul.f32 1.0, %v1139
    %v1141 = vrcp.pop %v1112
    %v1142 = vmul.f32 1.0, %v1141
    %v1143 = vrcp.pop %v1113
    %v1144 = vmul.f32 1.0, %v1143
    %v1145 = vrcp.pop %v1114
    %v1146 = vmul.f32 1.0, %v1145
    %v1147 = vmul.f32 %v1035, %v1116
    %v1148 = vmul.f32 %v1036, %v1118
    %v1149 = vmul.f32 %v1037, %v1120
    %v1150 = vmul.f32 %v1038, %v1122
    %v1151 = vmul.f32 %v1039, %v1124
    %v1152 = vmul.f32 %v1040, %v1126
    %v1153 = vmul.f32 %v1041, %v1128
    %v1154 = vmul.f32 %v1042, %v1130
    %v1155 = vmul.f32 %v1043, %v1132
    %v1156 = vmul.f32 %v1044, %v1134
    %v1157 = vmul.f32 %v1045, %v1136
    %v1158 = vmul.f32 %v1046, %v1138
    %v1159 = vmul.f32 %v1047, %v1140
    %v1160 = vmul.f32 %v1048, %v1142
    %v1161 = vmul.f32 %v1049, %v1144
    %v1162 = vmul.f32 %v1050, %v1146
    %v1163 = vpack.c.bf16 %v1151, %v1147
    %v1164 = vpack.c.bf16 %v1152, %v1148
    %v1165 = vpack.c.bf16 %v1153, %v1149
    %v1166 = vpack.c.bf16 %v1154, %v1150
    %v1167 = vpack.c.bf16 %v1159, %v1155
    %v1168 = vpack.c.bf16 %v1160, %v1156
    %v1169 = vpack.c.bf16 %v1161, %v1157
    %v1170 = vpack.c.bf16 %v1162, %v1158
    %v1171 = vld [vmem:[#allocation7] sm:$0xf]
    %v1172 = vld [vmem:[#allocation7 + $0x4] sm:$0xf]
    %v1173 = vld [vmem:[#allocation7 + $0x8] sm:$0xf]
    %v1174 = vld [vmem:[#allocation7 + $0xc] sm:$0xf]
    %v1175 = vld [vmem:[#allocation7 + $0x10] sm:$0xf]
    %v1176 = vld [vmem:[#allocation7 + $0x14] sm:$0xf]
    %v1177 = vld [vmem:[#allocation7 + $0x18] sm:$0xf]
    %v1178 = vld [vmem:[#allocation7 + $0x1c] sm:$0xf]
    %v1179 = vld [vmem:[#allocation7 + $0x20] sm:$0xf]
    %v1180 = vld [vmem:[#allocation7 + $0x24] sm:$0xf]
    %v1181 = vld [vmem:[#allocation7 + $0x28] sm:$0xf]
    %v1182 = vld [vmem:[#allocation7 + $0x2c] sm:$0xf]
    %v1183 = vld [vmem:[#allocation7 + $0x30] sm:$0xf]
    %v1184 = vld [vmem:[#allocation7 + $0x34] sm:$0xf]
    %v1185 = vld [vmem:[#allocation7 + $0x38] sm:$0xf]
    %v1186 = vld [vmem:[#allocation7 + $0x3c] sm:$0xf]
    %v1187 = vld [vmem:[#allocation7 + $0x40] sm:$0xf]
    %v1188 = vld [vmem:[#allocation7 + $0x44] sm:$0xf]
    %v1189 = vld [vmem:[#allocation7 + $0x48] sm:$0xf]
    %v1190 = vld [vmem:[#allocation7 + $0x4c] sm:$0xf]
    %v1191 = vld [vmem:[#allocation7 + $0x50] sm:$0xf]
    %v1192 = vld [vmem:[#allocation7 + $0x54] sm:$0xf]
    %v1193 = vld [vmem:[#allocation7 + $0x58] sm:$0xf]
    %v1194 = vld [vmem:[#allocation7 + $0x5c] sm:$0xf]
    %v1195 = vld [vmem:[#allocation7 + $0x60] sm:$0xf]
    %v1196 = vld [vmem:[#allocation7 + $0x64] sm:$0xf]
    %v1197 = vld [vmem:[#allocation7 + $0x68] sm:$0xf]
    %v1198 = vld [vmem:[#allocation7 + $0x6c] sm:$0xf]
    %v1199 = vld [vmem:[#allocation7 + $0x70] sm:$0xf]
    %v1200 = vld [vmem:[#allocation7 + $0x74] sm:$0xf]
    %v1201 = vld [vmem:[#allocation7 + $0x78] sm:$0xf]
    %v1202 = vld [vmem:[#allocation7 + $0x7c] sm:$0xf]
    %v1203 = vld [vmem:[#allocation7 + $0x80] sm:$0xf]
    %v1204 = vld [vmem:[#allocation7 + $0x84] sm:$0xf]
    %v1205 = vld [vmem:[#allocation7 + $0x88] sm:$0xf]
    %v1206 = vld [vmem:[#allocation7 + $0x8c] sm:$0xf]
    %v1207 = vld [vmem:[#allocation7 + $0x90] sm:$0xf]
    %v1208 = vld [vmem:[#allocation7 + $0x94] sm:$0xf]
    %v1209 = vld [vmem:[#allocation7 + $0x98] sm:$0xf]
    %v1210 = vld [vmem:[#allocation7 + $0x9c] sm:$0xf]
    %v1211 = vld [vmem:[#allocation7 + $0xa0] sm:$0xf]
    %v1212 = vld [vmem:[#allocation7 + $0xa4] sm:$0xf]
    %v1213 = vld [vmem:[#allocation7 + $0xa8] sm:$0xf]
    %v1214 = vld [vmem:[#allocation7 + $0xac] sm:$0xf]
    %v1215 = vld [vmem:[#allocation7 + $0xb0] sm:$0xf]
    %v1216 = vld [vmem:[#allocation7 + $0xb4] sm:$0xf]
    %v1217 = vld [vmem:[#allocation7 + $0xb8] sm:$0xf]
    %v1218 = vld [vmem:[#allocation7 + $0xbc] sm:$0xf]
    %v1219 = vld [vmem:[#allocation7 + $0xc0] sm:$0xf]
    %v1220 = vld [vmem:[#allocation7 + $0xc4] sm:$0xf]
    %v1221 = vld [vmem:[#allocation7 + $0xc8] sm:$0xf]
    %v1222 = vld [vmem:[#allocation7 + $0xcc] sm:$0xf]
    %v1223 = vld [vmem:[#allocation7 + $0xd0] sm:$0xf]
    %v1224 = vld [vmem:[#allocation7 + $0xd4] sm:$0xf]
    %v1225 = vld [vmem:[#allocation7 + $0xd8] sm:$0xf]
    %v1226 = vld [vmem:[#allocation7 + $0xdc] sm:$0xf]
    %v1227 = vld [vmem:[#allocation7 + $0xe0] sm:$0xf]
    %v1228 = vld [vmem:[#allocation7 + $0xe4] sm:$0xf]
    %v1229 = vld [vmem:[#allocation7 + $0xe8] sm:$0xf]
    %v1230 = vld [vmem:[#allocation7 + $0xec] sm:$0xf]
    %v1231 = vld [vmem:[#allocation7 + $0xf0] sm:$0xf]
    %v1232 = vld [vmem:[#allocation7 + $0xf4] sm:$0xf]
    %v1233 = vld [vmem:[#allocation7 + $0xf8] sm:$0xf]
    %v1234 = vld [vmem:[#allocation7 + $0xfc] sm:$0xf]
    %v1235 = vld [vmem:[%s4] sm:$0x1]
    %v1237 = vlaneseq
    %v1238 = vshrl.u32 %v1237, 7
    %v1239 = vsub.s32 0, %v1238
    %v1240 = vrot.slane %v1235, %v1239
    %v1306 = vunpack.c.l.b16 %v1171
    %v1307 = vunpack.c.l.b16 %v1172
    %v1308 = vunpack.c.l.b16 %v1173
    %v1309 = vunpack.c.l.b16 %v1174
    %v1310 = vunpack.c.l.b16 %v1175
    %v1311 = vunpack.c.l.b16 %v1176
    %v1312 = vunpack.c.l.b16 %v1177
    %v1313 = vunpack.c.l.b16 %v1178
    %v1314 = vunpack.c.l.b16 %v1179
    %v1315 = vunpack.c.l.b16 %v1180
    %v1316 = vunpack.c.l.b16 %v1181
    %v1317 = vunpack.c.l.b16 %v1182
    %v1318 = vunpack.c.l.b16 %v1183
    %v1319 = vunpack.c.l.b16 %v1184
    %v1320 = vunpack.c.l.b16 %v1185
    %v1321 = vunpack.c.l.b16 %v1186
    %v1322 = vunpack.c.l.b16 %v1187
    %v1323 = vunpack.c.l.b16 %v1188
    %v1324 = vunpack.c.l.b16 %v1189
    %v1325 = vunpack.c.l.b16 %v1190
    %v1326 = vunpack.c.l.b16 %v1191
    %v1327 = vunpack.c.l.b16 %v1192
    %v1328 = vunpack.c.l.b16 %v1193
    %v1329 = vunpack.c.l.b16 %v1194
    %v1330 = vunpack.c.l.b16 %v1195
    %v1331 = vunpack.c.l.b16 %v1196
    %v1332 = vunpack.c.l.b16 %v1197
    %v1333 = vunpack.c.l.b16 %v1198
    %v1334 = vunpack.c.l.b16 %v1199
    %v1335 = vunpack.c.l.b16 %v1200
    %v1336 = vunpack.c.l.b16 %v1201
    %v1337 = vunpack.c.l.b16 %v1202
    %v1338 = vunpack.c.l.b16 %v1203
    %v1339 = vunpack.c.l.b16 %v1204
    %v1340 = vunpack.c.l.b16 %v1205
    %v1341 = vunpack.c.l.b16 %v1206
    %v1342 = vunpack.c.l.b16 %v1207
    %v1343 = vunpack.c.l.b16 %v1208
    %v1344 = vunpack.c.l.b16 %v1209
    %v1345 = vunpack.c.l.b16 %v1210
    %v1346 = vunpack.c.l.b16 %v1211
    %v1347 = vunpack.c.l.b16 %v1212
    %v1348 = vunpack.c.l.b16 %v1213
    %v1349 = vunpack.c.l.b16 %v1214
    %v1350 = vunpack.c.l.b16 %v1215
    %v1351 = vunpack.c.l.b16 %v1216
    %v1352 = vunpack.c.l.b16 %v1217
    %v1353 = vunpack.c.l.b16 %v1218
    %v1354 = vunpack.c.l.b16 %v1219
    %v1355 = vunpack.c.l.b16 %v1220
    %v1356 = vunpack.c.l.b16 %v1221
    %v1357 = vunpack.c.l.b16 %v1222
    %v1358 = vunpack.c.l.b16 %v1223
    %v1359 = vunpack.c.l.b16 %v1224
    %v1360 = vunpack.c.l.b16 %v1225
    %v1361 = vunpack.c.l.b16 %v1226
    %v1362 = vunpack.c.l.b16 %v1227
    %v1363 = vunpack.c.l.b16 %v1228
    %v1364 = vunpack.c.l.b16 %v1229
    %v1365 = vunpack.c.l.b16 %v1230
    %v1366 = vunpack.c.l.b16 %v1231
    %v1367 = vunpack.c.l.b16 %v1232
    %v1368 = vunpack.c.l.b16 %v1233
    %v1369 = vunpack.c.l.b16 %v1234
    %v1370 = vpack.c.b16 %v1307, %v1306
    %v1371 = vpack.c.b16 %v1309, %v1308
    %v1372 = vpack.c.b16 %v1311, %v1310
    %v1373 = vpack.c.b16 %v1313, %v1312
    %v1374 = vpack.c.b16 %v1315, %v1314
    %v1375 = vpack.c.b16 %v1317, %v1316
    %v1376 = vpack.c.b16 %v1319, %v1318
    %v1377 = vpack.c.b16 %v1321, %v1320
    %v1378 = vpack.c.b16 %v1323, %v1322
    %v1379 = vpack.c.b16 %v1325, %v1324
    %v1380 = vpack.c.b16 %v1327, %v1326
    %v1381 = vpack.c.b16 %v1329, %v1328
    %v1382 = vpack.c.b16 %v1331, %v1330
    %v1383 = vpack.c.b16 %v1333, %v1332
    %v1384 = vpack.c.b16 %v1335, %v1334
    %v1385 = vpack.c.b16 %v1337, %v1336
    %v1386 = vpack.c.b16 %v1339, %v1338
    %v1387 = vpack.c.b16 %v1341, %v1340
    %v1388 = vpack.c.b16 %v1343, %v1342
    %v1389 = vpack.c.b16 %v1345, %v1344
    %v1390 = vpack.c.b16 %v1347, %v1346
    %v1391 = vpack.c.b16 %v1349, %v1348
    %v1392 = vpack.c.b16 %v1351, %v1350
    %v1393 = vpack.c.b16 %v1353, %v1352
    %v1394 = vpack.c.b16 %v1355, %v1354
    %v1395 = vpack.c.b16 %v1357, %v1356
    %v1396 = vpack.c.b16 %v1359, %v1358
    %v1397 = vpack.c.b16 %v1361, %v1360
    %v1398 = vpack.c.b16 %v1363, %v1362
    %v1399 = vpack.c.b16 %v1365, %v1364
    %v1400 = vpack.c.b16 %v1367, %v1366
    %v1401 = vpack.c.b16 %v1369, %v1368
    %1434 = vmatprep.subr.bf16.mxu0 0
    %1435 = vmatpush1.bf16.msra.mxu0 %v1370
    %1436 = vmatprep.subr.bf16.mxu0 0
    %1437 = vmatpush1.bf16.msra.mxu0 %v1371
    %1438 = vmatprep.subr.bf16.mxu0 0
    %1439 = vmatpush1.bf16.msra.mxu0 %v1372
    %1440 = vmatprep.subr.bf16.mxu0 0
    %1441 = vmatpush1.bf16.msra.mxu0 %v1373
    %1442 = vmatprep.subr.bf16.mxu0 0
    %1443 = vmatpush1.bf16.msra.mxu0 %v1374
    %1444 = vmatprep.subr.bf16.mxu0 0
    %1445 = vmatpush1.bf16.msra.mxu0 %v1375
    %1446 = vmatprep.subr.bf16.mxu0 0
    %1447 = vmatpush1.bf16.msra.mxu0 %v1376
    %1448 = vmatprep.subr.bf16.mxu0 0
    %1449 = vmatpush1.bf16.msra.mxu0 %v1377
    %1450 = vmatprep.subr.bf16.mxu0 0
    %1451 = vmatpush1.bf16.msra.mxu0 %v1378
    %1452 = vmatprep.subr.bf16.mxu0 0
    %1453 = vmatpush1.bf16.msra.mxu0 %v1379
    %1454 = vmatprep.subr.bf16.mxu0 0
    %1455 = vmatpush1.bf16.msra.mxu0 %v1380
    %1456 = vmatprep.subr.bf16.mxu0 0
    %1457 = vmatpush1.bf16.msra.mxu0 %v1381
    %1458 = vmatprep.subr.bf16.mxu0 0
    %1459 = vmatpush1.bf16.msra.mxu0 %v1382
    %1460 = vmatprep.subr.bf16.mxu0 0
    %1461 = vmatpush1.bf16.msra.mxu0 %v1383
    %1462 = vmatprep.subr.bf16.mxu0 0
    %1463 = vmatpush1.bf16.msra.mxu0 %v1384
    %1464 = vmatprep.subr.bf16.mxu0 0
    %1465 = vmatpush1.bf16.msra.mxu0 %v1385
    %1466 = vmatprep.mubr.bf16.mxu0 %v1164
    %1467 = vmatmul.mubr.bf16.gmra.mrb[0].mxu0 %v1163
    %v1468 = vpop.f32.mrb[0].mxu0
    %v1469 = vadd.f32 %v1240, %v1468
    %v1470 = vpop.f32.mrb[0].mxu0
    %v1471 = vpop.f32.mrb[0].mxu0
    %v1472 = vadd.f32 %v1240, %v1471
    %v1473 = vpop.f32.mrb[0].mxu0
    %1474 = vmatprep.mubr.bf16.mxu0 %v1168
    %1475 = vmatmul.mubr.bf16.gmra.mrb[0].mxu0 %v1167
    %v1476 = vpop.f32.mrb[0].mxu0
    %v1477 = vadd.f32 %v1240, %v1476
    %v1478 = vpop.f32.mrb[0].mxu0
    %v1479 = vpop.f32.mrb[0].mxu0
    %v1480 = vadd.f32 %v1240, %v1479
    %v1481 = vpop.f32.mrb[0].mxu0
    %1482 = vdwg.mxu0
    %1483 = vmatprep.subr.bf16.mxu0 0
    %1484 = vmatpush1.bf16.msra.mxu0 %v1386
    %1485 = vmatprep.subr.bf16.mxu0 0
    %1486 = vmatpush1.bf16.msra.mxu0 %v1387
    %1487 = vmatprep.subr.bf16.mxu0 0
    %1488 = vmatpush1.bf16.msra.mxu0 %v1388
    %1489 = vmatprep.subr.bf16.mxu0 0
    %1490 = vmatpush1.bf16.msra.mxu0 %v1389
    %1491 = vmatprep.subr.bf16.mxu0 0
    %1492 = vmatpush1.bf16.msra.mxu0 %v1390
    %1493 = vmatprep.subr.bf16.mxu0 0
    %1494 = vmatpush1.bf16.msra.mxu0 %v1391
    %1495 = vmatprep.subr.bf16.mxu0 0
    %1496 = vmatpush1.bf16.msra.mxu0 %v1392
    %1497 = vmatprep.subr.bf16.mxu0 0
    %1498 = vmatpush1.bf16.msra.mxu0 %v1393
    %1499 = vmatprep.subr.bf16.mxu0 0
    %1500 = vmatpush1.bf16.msra.mxu0 %v1394
    %1501 = vmatprep.subr.bf16.mxu0 0
    %1502 = vmatpush1.bf16.msra.mxu0 %v1395
    %1503 = vmatprep.subr.bf16.mxu0 0
    %1504 = vmatpush1.bf16.msra.mxu0 %v1396
    %1505 = vmatprep.subr.bf16.mxu0 0
    %1506 = vmatpush1.bf16.msra.mxu0 %v1397
    %1507 = vmatprep.subr.bf16.mxu0 0
    %1508 = vmatpush1.bf16.msra.mxu0 %v1398
    %1509 = vmatprep.subr.bf16.mxu0 0
    %1510 = vmatpush1.bf16.msra.mxu0 %v1399
    %1511 = vmatprep.subr.bf16.mxu0 0
    %1512 = vmatpush1.bf16.msra.mxu0 %v1400
    %1513 = vmatprep.subr.bf16.mxu0 0
    %1514 = vmatpush1.bf16.msra.mxu0 %v1401
    %1515 = vmatprep.mubr.bf16.mxu0 %v1166
    %1516 = vmatmul.mubr.bf16.gmra.mrb[0].mxu0 %v1165
    %v1517 = vpop.f32.mrb[0].mxu0
    %v1518 = vadd.f32 %v1469, %v1517
    %v1519 = vpop.f32.mrb[0].mxu0
    %v1520 = vpop.f32.mrb[0].mxu0
    %v1521 = vadd.f32 %v1472, %v1520
    %v1522 = vpop.f32.mrb[0].mxu0
    %1523 = vmatprep.mubr.bf16.mxu0 %v1170
    %1524 = vmatmul.mubr.bf16.gmra.mrb[0].mxu0 %v1169
    %v1525 = vpop.f32.mrb[0].mxu0
    %v1526 = vadd.f32 %v1477, %v1525
    %v1527 = vpop.f32.mrb[0].mxu0
    %v1528 = vpop.f32.mrb[0].mxu0
    %v1529 = vadd.f32 %v1480, %v1528
    %v1530 = vpop.f32.mrb[0].mxu0
    %1531 = vdwg.mxu0
    %v1532 = vadd.f32 %v1518, %v63
    %v1533 = vadd.f32 %v1521, %v64
    %v1534 = vadd.f32 %v1526, %v65
    %v1535 = vadd.f32 %v1529, %v66
    %1536 = vst [vmem:[#allocation8] sm:$0xff] %v1532
    %1537 = vst [vmem:[#allocation8 + $0x8] sm:$0xff] %v1533
    %1538 = vst [vmem:[#allocation8 + $0x10] sm:$0xff] %v1534
    %1539 = vst [vmem:[#allocation8 + $0x18] sm:$0xff] %v1535
    // Predicated region
    $region34: #{tpu_custom_call.1} parent=1 // pred_check
      _
    $region35: #{tpu_custom_call.1} parent=1 // pred_check_branch
      %1541 = sbr.rel (0) target = $region37
    $region36: #{tpu_custom_call.1} parent=1 // pred_region
      %s1543 = ssub.s32 512, 512
      %1544 = vsyncadd [#allocation4], %s1543
      %s1545 = sshll.u32 [#allocation8], 4
      %s1546 = int_to_ptr.vmem [resolvable:$true] %s1545
      %1551 = dma.vmem_to_hbm [thread:$0]  %s1546, 512, %s5, [#allocation4], 128, 128, 8
    $region37: #{tpu_custom_call.1} parent=1 // pred_fallthru
      _
    // Predicated region
    $region38: #{tpu_custom_call.1} parent=1 // pred_check
      _
    $region39: #{tpu_custom_call.1} parent=1 // pred_check_branch
      %1553 = sbr.rel (0) target = $region41
    $region40: #{tpu_custom_call.1} parent=1 // pred_region
      %1554 = dma.done [#allocation4], 512
    $region41: #{tpu_custom_call.1} parent=1 // pred_fallthru
      _
    %1555 = vsyncpa [#allocation3], 1
    %1556 = vsyncpa [#allocation6], 1
    %1557 = vsyncpa [#allocation4], 1

</llo_original>
